<compile_context>
chip_gen: v5e
topology: v5e:2x2
jax: 0.10.0
libtpu: 0.0.40
codegen_flags: <defaults>
</compile_context>

<pallas_src>
import functools

import jax
import jax.numpy as jnp
from jax.experimental import pallas as pl
from jax.experimental.pallas import tpu as pltpu
import numpy as np


def _trading_kernel(x_ref,                  # (T*B, D)  time-major, rows grouped by timestep
                    wih0, whh0, b0,         # layer-0 LSTM: (D,4H), (H,4H), (1,4H)
                    w1s, b1,                # layer-1 LSTM fused: (2H,4H) = [wih1; whh1], (1,4H)
                    wa, ba,                 # attention_fc: (H,H), (1,H)
                    v,                      # attention_vector: (H,1)
                    wc1, bc1, wc2, bc2,     # classifier: (H,H/2),(1,H/2),(H/2,3),(1,3)
                    out_ref,                # (B, 3)
                    *, T, B):
    H = whh0.shape[0]

    # ---- hoisted weight reads (only what the recurrent loop needs) ----
    Whh0 = whh0[...]
    W1s = w1s[...]
    B1 = b1[...]

    # ---- hoisted layer-0 input projection: one big matmul for all timesteps ----
    pre0 = jnp.dot(x_ref[...], wih0[...], preferred_element_type=jnp.float32) + b0[...]  # (T*B,4H)

    def lstm_combine(g, c_prev):
        # Vreg-wide nonlinearities (4H = 128 lanes), gate slices only for the combine.
        s = jax.nn.sigmoid(g)
        th = jnp.tanh(g)
        i = s[:, 0 * H:1 * H]
        f = s[:, 1 * H:2 * H]
        gg = th[:, 2 * H:3 * H]
        o = s[:, 3 * H:4 * H]
        c_new = f * c_prev + i * gg
        h_new = o * jnp.tanh(c_new)
        return h_new, c_new

    h1 = jnp.zeros((B, H), jnp.float32)
    c1 = jnp.zeros((B, H), jnp.float32)
    h2 = jnp.zeros((B, H), jnp.float32)
    c2 = jnp.zeros((B, H), jnp.float32)

    outs = []
    for t in range(T):  # T is static -> fully unrolled, constant indices, state stays in vregs
        # layer 0: only the recurrent matmul is on the serial chain
        g0 = jnp.dot(h1, Whh0, preferred_element_type=jnp.float32) + pre0[t * B:(t + 1) * B, :]
        h1, c1 = lstm_combine(g0, c1)
        # layer 1: fused input+recurrent matmul (single MXU push)
        hcat = jnp.concatenate([h1, h2], axis=-1)                       # (B, 2H)
        g1 = jnp.dot(hcat, W1s, preferred_element_type=jnp.float32) + B1
        h2, c2 = lstm_combine(g1, c2)
        outs.append(h2)

    # ---- attention, hoisted out of the loop as batched matmuls over all T*B rows ----
    lstm_flat = jnp.concatenate(outs, axis=0)                           # (T*B, H)
    a = jnp.tanh(jnp.dot(lstm_flat, wa[...], preferred_element_type=jnp.float32) + ba[...])
    e = jnp.dot(a, v[...], preferred_element_type=jnp.float32)          # (T*B, 1)
    e3 = e.reshape(T, B, 1)

    # softmax over time (axis 0)
    m = jnp.max(e3, axis=0, keepdims=True)
    p = jnp.exp(e3 - m)
    w3 = p / jnp.sum(p, axis=0, keepdims=True)                          # (T, B, 1)

    # context vector: weighted sum over time, static per-timestep slices (values, no scratch)
    ctx = jnp.zeros((B, H), jnp.float32)
    for t in range(T):
        ctx = ctx + outs[t] * w3[t]

    # classifier: Linear -> ReLU -> (Dropout = identity) -> Linear
    hcls = jnp.maximum(
        jnp.dot(ctx, wc1[...], preferred_element_type=jnp.float32) + bc1[...], 0.0)
    out_ref[...] = jnp.dot(hcls, wc2[...], preferred_element_type=jnp.float32) + bc2[...]


def trading_forward(x, p):
    """x: (B, T, D) float32, batch-first like PyTorch. Returns (B, 3)."""
    B, T, D = x.shape
    H = p["whh0_t"].shape[0]

    # time-major, rows grouped by timestep: row index = t*B + b
    xt = jnp.transpose(x, (1, 0, 2)).reshape(T * B, D)
    # fuse layer-1 input + recurrent weights into one (2H, 4H) matrix
    w1s = jnp.concatenate([p["wih1_t"], p["whh1_t"]], axis=0)

    args = (xt,
            p["wih0_t"], p["whh0_t"], p["b0"],
            w1s, p["b1"],
            p["wa_t"], p["ba"], p["v_t"],
            p["wc1_t"], p["bc1"], p["wc2_t"], p["bc2"])

    vmem = pl.BlockSpec(memory_space=pltpu.MemorySpace.VMEM)
    kernel = functools.partial(_trading_kernel, T=T, B=B)
    return pl.pallas_call(
        kernel,
        out_shape=jax.ShapeDtypeStruct((B, 3), jnp.float32),
        in_specs=[vmem] * len(args),
        out_specs=vmem,
    )(*args)


def make_params(key, input_dim, hidden_dim):
    """Deterministic synthetic parameters, pre-transposed for `x @ W` matmuls."""
    H = hidden_dim
    ks = jax.random.split(key, 16)
    s_lstm = 1.0 / np.sqrt(H)

    def u(k, shape, s):
        return jax.random.uniform(k, shape, jnp.float32, -s, s)

    p = {
        # LSTM layer 0 (input_dim -> H); PyTorch weights are (4H, in); store transposed.
        "wih0_t": u(ks[0], (input_dim, 4 * H), s_lstm),
        "whh0_t": u(ks[1], (H, 4 * H), s_lstm),
        "b0": u(ks[2], (1, 4 * H), s_lstm) + u(ks[3], (1, 4 * H), s_lstm),  # b_ih + b_hh
        # LSTM layer 1 (H -> H)
        "wih1_t": u(ks[4], (H, 4 * H), s_lstm),
        "whh1_t": u(ks[5], (H, 4 * H), s_lstm),
        "b1": u(ks[6], (1, 4 * H), s_lstm) + u(ks[7], (1, 4 * H), s_lstm),
        # attention_fc (H -> H) and attention_vector (H -> 1, no bias)
        "wa_t": u(ks[8], (H, H), 1.0 / np.sqrt(H)),
        "ba": u(ks[9], (1, H), 1.0 / np.sqrt(H)),
        "v_t": u(ks[10], (H, 1), 1.0 / np.sqrt(H)),
        # classifier: H -> H//2 -> 3
        "wc1_t": u(ks[11], (H, H // 2), 1.0 / np.sqrt(H)),
        "bc1": u(ks[12], (1, H // 2), 1.0 / np.sqrt(H)),
        "wc2_t": u(ks[13], (H // 2, 3), 1.0 / np.sqrt(H // 2)),
        "bc2": u(ks[14], (1, 3), 1.0 / np.sqrt(H // 2)),
    }
    return p


def reference_forward(x, p):
    """Pure-JAX reference matching the PyTorch forward (eval mode)."""
    B, T, _ = x.shape

    def lstm_layer(inp, wih_t, whh_t, b):
        H = whh_t.shape[0]
        h = jnp.zeros((B, H), jnp.float32)
        c = jnp.zeros((B, H), jnp.float32)
        outs = []
        for t in range(T):
            g = inp[:, t, :] @ wih_t + h @ whh_t + b
            i = jax.nn.sigmoid(g[:, :H])
            f = jax.nn.sigmoid(g[:, H:2 * H])
            gg = jnp.tanh(g[:, 2 * H:3 * H])
            o = jax.nn.sigmoid(g[:, 3 * H:])
            c = f * c + i * gg
            h = o * jnp.tanh(c)
            outs.append(h)
        return jnp.stack(outs, axis=1)                          # (B, T, H)

    l1 = lstm_layer(x, p["wih0_t"], p["whh0_t"], p["b0"])
    l2 = lstm_layer(l1, p["wih1_t"], p["whh1_t"], p["b1"])
    a = jnp.tanh(l2 @ p["wa_t"] + p["ba"])
    e = a @ p["v_t"]                                            # (B, T, 1)
    w = jax.nn.softmax(e, axis=1)
    ctx = jnp.sum(l2 * w, axis=1)                               # (B, H)
    h1 = jax.nn.relu(ctx @ p["wc1_t"] + p["bc1"])
    return h1 @ p["wc2_t"] + p["bc2"]                           # (B, 3)


if __name__ == "__main__":
    B, T, D, H = 2, 8, 4, 32     # batch, seq_len, input_dim, hidden_dim
    key = jax.random.PRNGKey(0)
    kx, kp = jax.random.split(key)
    x = jax.random.normal(kx, (B, T, D), jnp.float32)
    params = make_params(kp, D, H)

    out = jax.block_until_ready(trading_forward(x, params))
    ref = jax.block_until_ready(reference_forward(x, params))

    assert out.shape == (B, 3)
    np.testing.assert_allclose(np.asarray(out), np.asarray(ref), rtol=1e-4, atol=1e-5)
    print("KERNEL_OK")
</pallas_src>

<mosaic_0001>
module attributes {stable_mosaic.version = 11 : i64} {
  func.func @_trading_kernel(%arg0: memref<16x4xf32, #tpu.memory_space<vmem>>, %arg1: memref<4x128xf32, #tpu.memory_space<vmem>>, %arg2: memref<32x128xf32, #tpu.memory_space<vmem>>, %arg3: memref<1x128xf32, #tpu.memory_space<vmem>>, %arg4: memref<64x128xf32, #tpu.memory_space<vmem>>, %arg5: memref<1x128xf32, #tpu.memory_space<vmem>>, %arg6: memref<32x32xf32, #tpu.memory_space<vmem>>, %arg7: memref<1x32xf32, #tpu.memory_space<vmem>>, %arg8: memref<32x1xf32, #tpu.memory_space<vmem>>, %arg9: memref<32x16xf32, #tpu.memory_space<vmem>>, %arg10: memref<1x16xf32, #tpu.memory_space<vmem>>, %arg11: memref<16x3xf32, #tpu.memory_space<vmem>>, %arg12: memref<1x3xf32, #tpu.memory_space<vmem>>, %arg13: memref<2x3xf32, #tpu.memory_space<vmem>>) attributes {dimension_semantics = [], scalar_prefetch = 0 : i64, scratch_operands = 0 : i64, tpu.core_type = #tpu.core_type<tc>} {
    %c0 = arith.constant 0 : index
    %c0_0 = arith.constant 0 : index
    %0 = vector.load %arg2[%c0, %c0_0] : memref<32x128xf32, #tpu.memory_space<vmem>>, vector<32x128xf32>
    %c0_1 = arith.constant 0 : index
    %c0_2 = arith.constant 0 : index
    %1 = vector.load %arg4[%c0_1, %c0_2] : memref<64x128xf32, #tpu.memory_space<vmem>>, vector<64x128xf32>
    %c0_3 = arith.constant 0 : index
    %c0_4 = arith.constant 0 : index
    %2 = vector.load %arg5[%c0_3, %c0_4] : memref<1x128xf32, #tpu.memory_space<vmem>>, vector<1x128xf32>
    %c0_5 = arith.constant 0 : index
    %c0_6 = arith.constant 0 : index
    %3 = vector.load %arg0[%c0_5, %c0_6] : memref<16x4xf32, #tpu.memory_space<vmem>>, vector<16x4xf32>
    %c0_7 = arith.constant 0 : index
    %c0_8 = arith.constant 0 : index
    %4 = vector.load %arg1[%c0_7, %c0_8] : memref<4x128xf32, #tpu.memory_space<vmem>>, vector<4x128xf32>
    %cst = arith.constant dense<0.000000e+00> : vector<16x128xf32>
    %5 = tpu.matmul %3, %4, %cst {dimension_numbers = #tpu.dot_dimension_numbers<[1], [0], [0], [1], [0, 0, 1, 1], [], []>} : vector<16x4xf32>, vector<4x128xf32>, vector<16x128xf32> -> vector<16x128xf32>
    %c0_9 = arith.constant 0 : index
    %c0_10 = arith.constant 0 : index
    %6 = vector.load %arg3[%c0_9, %c0_10] : memref<1x128xf32, #tpu.memory_space<vmem>>, vector<1x128xf32>
    %7 = vector.broadcast %6 : vector<1x128xf32> to vector<16x128xf32>
    %8 = arith.addf %5, %7 : vector<16x128xf32>
    %cst_11 = arith.constant 0.000000e+00 : f32
    %9 = vector.broadcast %cst_11 : f32 to vector<2x32xf32>
    %cst_12 = arith.constant 0.000000e+00 : f32
    %10 = vector.broadcast %cst_12 : f32 to vector<2x32xf32>
    %cst_13 = arith.constant 0.000000e+00 : f32
    %11 = vector.broadcast %cst_13 : f32 to vector<2x32xf32>
    %cst_14 = arith.constant 0.000000e+00 : f32
    %12 = vector.broadcast %cst_14 : f32 to vector<2x32xf32>
    %cst_15 = arith.constant dense<0.000000e+00> : vector<2x128xf32>
    %13 = tpu.matmul %9, %0, %cst_15 {dimension_numbers = #tpu.dot_dimension_numbers<[1], [0], [0], [1], [0, 0, 1, 1], [], []>} : vector<2x32xf32>, vector<32x128xf32>, vector<2x128xf32> -> vector<2x128xf32>
    %14 = vector.extract_strided_slice %8 {offsets = [0, 0], sizes = [2, 128], strides = [1, 1]} : vector<16x128xf32> to vector<2x128xf32>
    %15 = arith.addf %13, %14 : vector<2x128xf32>
    %16 = arith.negf %15 : vector<2x128xf32>
    %17 = math.exp %16 : vector<2x128xf32>
    %cst_16 = arith.constant 1.000000e+00 : f32
    %18 = vector.broadcast %cst_16 : f32 to vector<2x128xf32>
    %19 = arith.addf %18, %17 : vector<2x128xf32>
    %20 = arith.divf %18, %19 : vector<2x128xf32>
    %21 = math.tanh %15 : vector<2x128xf32>
    %22 = vector.extract_strided_slice %20 {offsets = [0, 0], sizes = [2, 32], strides = [1, 1]} : vector<2x128xf32> to vector<2x32xf32>
    %23 = vector.extract_strided_slice %20 {offsets = [0, 32], sizes = [2, 32], strides = [1, 1]} : vector<2x128xf32> to vector<2x32xf32>
    %24 = vector.extract_strided_slice %21 {offsets = [0, 64], sizes = [2, 32], strides = [1, 1]} : vector<2x128xf32> to vector<2x32xf32>
    %25 = vector.extract_strided_slice %20 {offsets = [0, 96], sizes = [2, 32], strides = [1, 1]} : vector<2x128xf32> to vector<2x32xf32>
    %26 = arith.mulf %23, %10 : vector<2x32xf32>
    %27 = arith.mulf %22, %24 : vector<2x32xf32>
    %28 = arith.addf %26, %27 : vector<2x32xf32>
    %29 = math.tanh %28 : vector<2x32xf32>
    %30 = arith.mulf %25, %29 : vector<2x32xf32>
    %31 = tpu.concatenate %30, %11 in 1 : vector<2x32xf32>, vector<2x32xf32> -> vector<2x64xf32>
    %cst_17 = arith.constant dense<0.000000e+00> : vector<2x128xf32>
    %32 = tpu.matmul %31, %1, %cst_17 {dimension_numbers = #tpu.dot_dimension_numbers<[1], [0], [0], [1], [0, 0, 1, 1], [], []>} : vector<2x64xf32>, vector<64x128xf32>, vector<2x128xf32> -> vector<2x128xf32>
    %33 = vector.broadcast %2 : vector<1x128xf32> to vector<2x128xf32>
    %34 = arith.addf %32, %33 : vector<2x128xf32>
    %35 = arith.negf %34 : vector<2x128xf32>
    %36 = math.exp %35 : vector<2x128xf32>
    %cst_18 = arith.constant 1.000000e+00 : f32
    %37 = vector.broadcast %cst_18 : f32 to vector<2x128xf32>
    %38 = arith.addf %37, %36 : vector<2x128xf32>
    %39 = arith.divf %37, %38 : vector<2x128xf32>
    %40 = math.tanh %34 : vector<2x128xf32>
    %41 = vector.extract_strided_slice %39 {offsets = [0, 0], sizes = [2, 32], strides = [1, 1]} : vector<2x128xf32> to vector<2x32xf32>
    %42 = vector.extract_strided_slice %39 {offsets = [0, 32], sizes = [2, 32], strides = [1, 1]} : vector<2x128xf32> to vector<2x32xf32>
    %43 = vector.extract_strided_slice %40 {offsets = [0, 64], sizes = [2, 32], strides = [1, 1]} : vector<2x128xf32> to vector<2x32xf32>
    %44 = vector.extract_strided_slice %39 {offsets = [0, 96], sizes = [2, 32], strides = [1, 1]} : vector<2x128xf32> to vector<2x32xf32>
    %45 = arith.mulf %42, %12 : vector<2x32xf32>
    %46 = arith.mulf %41, %43 : vector<2x32xf32>
    %47 = arith.addf %45, %46 : vector<2x32xf32>
    %48 = math.tanh %47 : vector<2x32xf32>
    %49 = arith.mulf %44, %48 : vector<2x32xf32>
    %cst_19 = arith.constant dense<0.000000e+00> : vector<2x128xf32>
    %50 = tpu.matmul %30, %0, %cst_19 {dimension_numbers = #tpu.dot_dimension_numbers<[1], [0], [0], [1], [0, 0, 1, 1], [], []>} : vector<2x32xf32>, vector<32x128xf32>, vector<2x128xf32> -> vector<2x128xf32>
    %51 = vector.extract_strided_slice %8 {offsets = [2, 0], sizes = [2, 128], strides = [1, 1]} : vector<16x128xf32> to vector<2x128xf32>
    %52 = arith.addf %50, %51 : vector<2x128xf32>
    %53 = arith.negf %52 : vector<2x128xf32>
    %54 = math.exp %53 : vector<2x128xf32>
    %cst_20 = arith.constant 1.000000e+00 : f32
    %55 = vector.broadcast %cst_20 : f32 to vector<2x128xf32>
    %56 = arith.addf %55, %54 : vector<2x128xf32>
    %57 = arith.divf %55, %56 : vector<2x128xf32>
    %58 = math.tanh %52 : vector<2x128xf32>
    %59 = vector.extract_strided_slice %57 {offsets = [0, 0], sizes = [2, 32], strides = [1, 1]} : vector<2x128xf32> to vector<2x32xf32>
    %60 = vector.extract_strided_slice %57 {offsets = [0, 32], sizes = [2, 32], strides = [1, 1]} : vector<2x128xf32> to vector<2x32xf32>
    %61 = vector.extract_strided_slice %58 {offsets = [0, 64], sizes = [2, 32], strides = [1, 1]} : vector<2x128xf32> to vector<2x32xf32>
    %62 = vector.extract_strided_slice %57 {offsets = [0, 96], sizes = [2, 32], strides = [1, 1]} : vector<2x128xf32> to vector<2x32xf32>
    %63 = arith.mulf %60, %28 : vector<2x32xf32>
    %64 = arith.mulf %59, %61 : vector<2x32xf32>
    %65 = arith.addf %63, %64 : vector<2x32xf32>
    %66 = math.tanh %65 : vector<2x32xf32>
    %67 = arith.mulf %62, %66 : vector<2x32xf32>
    %68 = tpu.concatenate %67, %49 in 1 : vector<2x32xf32>, vector<2x32xf32> -> vector<2x64xf32>
    %cst_21 = arith.constant dense<0.000000e+00> : vector<2x128xf32>
    %69 = tpu.matmul %68, %1, %cst_21 {dimension_numbers = #tpu.dot_dimension_numbers<[1], [0], [0], [1], [0, 0, 1, 1], [], []>} : vector<2x64xf32>, vector<64x128xf32>, vector<2x128xf32> -> vector<2x128xf32>
    %70 = vector.broadcast %2 : vector<1x128xf32> to vector<2x128xf32>
    %71 = arith.addf %69, %70 : vector<2x128xf32>
    %72 = arith.negf %71 : vector<2x128xf32>
    %73 = math.exp %72 : vector<2x128xf32>
    %cst_22 = arith.constant 1.000000e+00 : f32
    %74 = vector.broadcast %cst_22 : f32 to vector<2x128xf32>
    %75 = arith.addf %74, %73 : vector<2x128xf32>
    %76 = arith.divf %74, %75 : vector<2x128xf32>
    %77 = math.tanh %71 : vector<2x128xf32>
    %78 = vector.extract_strided_slice %76 {offsets = [0, 0], sizes = [2, 32], strides = [1, 1]} : vector<2x128xf32> to vector<2x32xf32>
    %79 = vector.extract_strided_slice %76 {offsets = [0, 32], sizes = [2, 32], strides = [1, 1]} : vector<2x128xf32> to vector<2x32xf32>
    %80 = vector.extract_strided_slice %77 {offsets = [0, 64], sizes = [2, 32], strides = [1, 1]} : vector<2x128xf32> to vector<2x32xf32>
    %81 = vector.extract_strided_slice %76 {offsets = [0, 96], sizes = [2, 32], strides = [1, 1]} : vector<2x128xf32> to vector<2x32xf32>
    %82 = arith.mulf %79, %47 : vector<2x32xf32>
    %83 = arith.mulf %78, %80 : vector<2x32xf32>
    %84 = arith.addf %82, %83 : vector<2x32xf32>
    %85 = math.tanh %84 : vector<2x32xf32>
    %86 = arith.mulf %81, %85 : vector<2x32xf32>
    %cst_23 = arith.constant dense<0.000000e+00> : vector<2x128xf32>
    %87 = tpu.matmul %67, %0, %cst_23 {dimension_numbers = #tpu.dot_dimension_numbers<[1], [0], [0], [1], [0, 0, 1, 1], [], []>} : vector<2x32xf32>, vector<32x128xf32>, vector<2x128xf32> -> vector<2x128xf32>
    %88 = vector.extract_strided_slice %8 {offsets = [4, 0], sizes = [2, 128], strides = [1, 1]} : vector<16x128xf32> to vector<2x128xf32>
    %89 = arith.addf %87, %88 : vector<2x128xf32>
    %90 = arith.negf %89 : vector<2x128xf32>
    %91 = math.exp %90 : vector<2x128xf32>
    %cst_24 = arith.constant 1.000000e+00 : f32
    %92 = vector.broadcast %cst_24 : f32 to vector<2x128xf32>
    %93 = arith.addf %92, %91 : vector<2x128xf32>
    %94 = arith.divf %92, %93 : vector<2x128xf32>
    %95 = math.tanh %89 : vector<2x128xf32>
    %96 = vector.extract_strided_slice %94 {offsets = [0, 0], sizes = [2, 32], strides = [1, 1]} : vector<2x128xf32> to vector<2x32xf32>
    %97 = vector.extract_strided_slice %94 {offsets = [0, 32], sizes = [2, 32], strides = [1, 1]} : vector<2x128xf32> to vector<2x32xf32>
    %98 = vector.extract_strided_slice %95 {offsets = [0, 64], sizes = [2, 32], strides = [1, 1]} : vector<2x128xf32> to vector<2x32xf32>
    %99 = vector.extract_strided_slice %94 {offsets = [0, 96], sizes = [2, 32], strides = [1, 1]} : vector<2x128xf32> to vector<2x32xf32>
    %100 = arith.mulf %97, %65 : vector<2x32xf32>
    %101 = arith.mulf %96, %98 : vector<2x32xf32>
    %102 = arith.addf %100, %101 : vector<2x32xf32>
    %103 = math.tanh %102 : vector<2x32xf32>
    %104 = arith.mulf %99, %103 : vector<2x32xf32>
    %105 = tpu.concatenate %104, %86 in 1 : vector<2x32xf32>, vector<2x32xf32> -> vector<2x64xf32>
    %cst_25 = arith.constant dense<0.000000e+00> : vector<2x128xf32>
    %106 = tpu.matmul %105, %1, %cst_25 {dimension_numbers = #tpu.dot_dimension_numbers<[1], [0], [0], [1], [0, 0, 1, 1], [], []>} : vector<2x64xf32>, vector<64x128xf32>, vector<2x128xf32> -> vector<2x128xf32>
    %107 = vector.broadcast %2 : vector<1x128xf32> to vector<2x128xf32>
    %108 = arith.addf %106, %107 : vector<2x128xf32>
    %109 = arith.negf %108 : vector<2x128xf32>
    %110 = math.exp %109 : vector<2x128xf32>
    %cst_26 = arith.constant 1.000000e+00 : f32
    %111 = vector.broadcast %cst_26 : f32 to vector<2x128xf32>
    %112 = arith.addf %111, %110 : vector<2x128xf32>
    %113 = arith.divf %111, %112 : vector<2x128xf32>
    %114 = math.tanh %108 : vector<2x128xf32>
    %115 = vector.extract_strided_slice %113 {offsets = [0, 0], sizes = [2, 32], strides = [1, 1]} : vector<2x128xf32> to vector<2x32xf32>
    %116 = vector.extract_strided_slice %113 {offsets = [0, 32], sizes = [2, 32], strides = [1, 1]} : vector<2x128xf32> to vector<2x32xf32>
    %117 = vector.extract_strided_slice %114 {offsets = [0, 64], sizes = [2, 32], strides = [1, 1]} : vector<2x128xf32> to vector<2x32xf32>
    %118 = vector.extract_strided_slice %113 {offsets = [0, 96], sizes = [2, 32], strides = [1, 1]} : vector<2x128xf32> to vector<2x32xf32>
    %119 = arith.mulf %116, %84 : vector<2x32xf32>
    %120 = arith.mulf %115, %117 : vector<2x32xf32>
    %121 = arith.addf %119, %120 : vector<2x32xf32>
    %122 = math.tanh %121 : vector<2x32xf32>
    %123 = arith.mulf %118, %122 : vector<2x32xf32>
    %cst_27 = arith.constant dense<0.000000e+00> : vector<2x128xf32>
    %124 = tpu.matmul %104, %0, %cst_27 {dimension_numbers = #tpu.dot_dimension_numbers<[1], [0], [0], [1], [0, 0, 1, 1], [], []>} : vector<2x32xf32>, vector<32x128xf32>, vector<2x128xf32> -> vector<2x128xf32>
    %125 = vector.extract_strided_slice %8 {offsets = [6, 0], sizes = [2, 128], strides = [1, 1]} : vector<16x128xf32> to vector<2x128xf32>
    %126 = arith.addf %124, %125 : vector<2x128xf32>
    %127 = arith.negf %126 : vector<2x128xf32>
    %128 = math.exp %127 : vector<2x128xf32>
    %cst_28 = arith.constant 1.000000e+00 : f32
    %129 = vector.broadcast %cst_28 : f32 to vector<2x128xf32>
    %130 = arith.addf %129, %128 : vector<2x128xf32>
    %131 = arith.divf %129, %130 : vector<2x128xf32>
    %132 = math.tanh %126 : vector<2x128xf32>
    %133 = vector.extract_strided_slice %131 {offsets = [0, 0], sizes = [2, 32], strides = [1, 1]} : vector<2x128xf32> to vector<2x32xf32>
    %134 = vector.extract_strided_slice %131 {offsets = [0, 32], sizes = [2, 32], strides = [1, 1]} : vector<2x128xf32> to vector<2x32xf32>
    %135 = vector.extract_strided_slice %132 {offsets = [0, 64], sizes = [2, 32], strides = [1, 1]} : vector<2x128xf32> to vector<2x32xf32>
    %136 = vector.extract_strided_slice %131 {offsets = [0, 96], sizes = [2, 32], strides = [1, 1]} : vector<2x128xf32> to vector<2x32xf32>
    %137 = arith.mulf %134, %102 : vector<2x32xf32>
    %138 = arith.mulf %133, %135 : vector<2x32xf32>
    %139 = arith.addf %137, %138 : vector<2x32xf32>
    %140 = math.tanh %139 : vector<2x32xf32>
    %141 = arith.mulf %136, %140 : vector<2x32xf32>
    %142 = tpu.concatenate %141, %123 in 1 : vector<2x32xf32>, vector<2x32xf32> -> vector<2x64xf32>
    %cst_29 = arith.constant dense<0.000000e+00> : vector<2x128xf32>
    %143 = tpu.matmul %142, %1, %cst_29 {dimension_numbers = #tpu.dot_dimension_numbers<[1], [0], [0], [1], [0, 0, 1, 1], [], []>} : vector<2x64xf32>, vector<64x128xf32>, vector<2x128xf32> -> vector<2x128xf32>
    %144 = vector.broadcast %2 : vector<1x128xf32> to vector<2x128xf32>
    %145 = arith.addf %143, %144 : vector<2x128xf32>
    %146 = arith.negf %145 : vector<2x128xf32>
    %147 = math.exp %146 : vector<2x128xf32>
    %cst_30 = arith.constant 1.000000e+00 : f32
    %148 = vector.broadcast %cst_30 : f32 to vector<2x128xf32>
    %149 = arith.addf %148, %147 : vector<2x128xf32>
    %150 = arith.divf %148, %149 : vector<2x128xf32>
    %151 = math.tanh %145 : vector<2x128xf32>
    %152 = vector.extract_strided_slice %150 {offsets = [0, 0], sizes = [2, 32], strides = [1, 1]} : vector<2x128xf32> to vector<2x32xf32>
    %153 = vector.extract_strided_slice %150 {offsets = [0, 32], sizes = [2, 32], strides = [1, 1]} : vector<2x128xf32> to vector<2x32xf32>
    %154 = vector.extract_strided_slice %151 {offsets = [0, 64], sizes = [2, 32], strides = [1, 1]} : vector<2x128xf32> to vector<2x32xf32>
    %155 = vector.extract_strided_slice %150 {offsets = [0, 96], sizes = [2, 32], strides = [1, 1]} : vector<2x128xf32> to vector<2x32xf32>
    %156 = arith.mulf %153, %121 : vector<2x32xf32>
    %157 = arith.mulf %152, %154 : vector<2x32xf32>
    %158 = arith.addf %156, %157 : vector<2x32xf32>
    %159 = math.tanh %158 : vector<2x32xf32>
    %160 = arith.mulf %155, %159 : vector<2x32xf32>
    %cst_31 = arith.constant dense<0.000000e+00> : vector<2x128xf32>
    %161 = tpu.matmul %141, %0, %cst_31 {dimension_numbers = #tpu.dot_dimension_numbers<[1], [0], [0], [1], [0, 0, 1, 1], [], []>} : vector<2x32xf32>, vector<32x128xf32>, vector<2x128xf32> -> vector<2x128xf32>
    %162 = vector.extract_strided_slice %8 {offsets = [8, 0], sizes = [2, 128], strides = [1, 1]} : vector<16x128xf32> to vector<2x128xf32>
    %163 = arith.addf %161, %162 : vector<2x128xf32>
    %164 = arith.negf %163 : vector<2x128xf32>
    %165 = math.exp %164 : vector<2x128xf32>
    %cst_32 = arith.constant 1.000000e+00 : f32
    %166 = vector.broadcast %cst_32 : f32 to vector<2x128xf32>
    %167 = arith.addf %166, %165 : vector<2x128xf32>
    %168 = arith.divf %166, %167 : vector<2x128xf32>
    %169 = math.tanh %163 : vector<2x128xf32>
    %170 = vector.extract_strided_slice %168 {offsets = [0, 0], sizes = [2, 32], strides = [1, 1]} : vector<2x128xf32> to vector<2x32xf32>
    %171 = vector.extract_strided_slice %168 {offsets = [0, 32], sizes = [2, 32], strides = [1, 1]} : vector<2x128xf32> to vector<2x32xf32>
    %172 = vector.extract_strided_slice %169 {offsets = [0, 64], sizes = [2, 32], strides = [1, 1]} : vector<2x128xf32> to vector<2x32xf32>
    %173 = vector.extract_strided_slice %168 {offsets = [0, 96], sizes = [2, 32], strides = [1, 1]} : vector<2x128xf32> to vector<2x32xf32>
    %174 = arith.mulf %171, %139 : vector<2x32xf32>
    %175 = arith.mulf %170, %172 : vector<2x32xf32>
    %176 = arith.addf %174, %175 : vector<2x32xf32>
    %177 = math.tanh %176 : vector<2x32xf32>
    %178 = arith.mulf %173, %177 : vector<2x32xf32>
    %179 = tpu.concatenate %178, %160 in 1 : vector<2x32xf32>, vector<2x32xf32> -> vector<2x64xf32>
    %cst_33 = arith.constant dense<0.000000e+00> : vector<2x128xf32>
    %180 = tpu.matmul %179, %1, %cst_33 {dimension_numbers = #tpu.dot_dimension_numbers<[1], [0], [0], [1], [0, 0, 1, 1], [], []>} : vector<2x64xf32>, vector<64x128xf32>, vector<2x128xf32> -> vector<2x128xf32>
    %181 = vector.broadcast %2 : vector<1x128xf32> to vector<2x128xf32>
    %182 = arith.addf %180, %181 : vector<2x128xf32>
    %183 = arith.negf %182 : vector<2x128xf32>
    %184 = math.exp %183 : vector<2x128xf32>
    %cst_34 = arith.constant 1.000000e+00 : f32
    %185 = vector.broadcast %cst_34 : f32 to vector<2x128xf32>
    %186 = arith.addf %185, %184 : vector<2x128xf32>
    %187 = arith.divf %185, %186 : vector<2x128xf32>
    %188 = math.tanh %182 : vector<2x128xf32>
    %189 = vector.extract_strided_slice %187 {offsets = [0, 0], sizes = [2, 32], strides = [1, 1]} : vector<2x128xf32> to vector<2x32xf32>
    %190 = vector.extract_strided_slice %187 {offsets = [0, 32], sizes = [2, 32], strides = [1, 1]} : vector<2x128xf32> to vector<2x32xf32>
    %191 = vector.extract_strided_slice %188 {offsets = [0, 64], sizes = [2, 32], strides = [1, 1]} : vector<2x128xf32> to vector<2x32xf32>
    %192 = vector.extract_strided_slice %187 {offsets = [0, 96], sizes = [2, 32], strides = [1, 1]} : vector<2x128xf32> to vector<2x32xf32>
    %193 = arith.mulf %190, %158 : vector<2x32xf32>
    %194 = arith.mulf %189, %191 : vector<2x32xf32>
    %195 = arith.addf %193, %194 : vector<2x32xf32>
    %196 = math.tanh %195 : vector<2x32xf32>
    %197 = arith.mulf %192, %196 : vector<2x32xf32>
    %cst_35 = arith.constant dense<0.000000e+00> : vector<2x128xf32>
    %198 = tpu.matmul %178, %0, %cst_35 {dimension_numbers = #tpu.dot_dimension_numbers<[1], [0], [0], [1], [0, 0, 1, 1], [], []>} : vector<2x32xf32>, vector<32x128xf32>, vector<2x128xf32> -> vector<2x128xf32>
    %199 = vector.extract_strided_slice %8 {offsets = [10, 0], sizes = [2, 128], strides = [1, 1]} : vector<16x128xf32> to vector<2x128xf32>
    %200 = arith.addf %198, %199 : vector<2x128xf32>
    %201 = arith.negf %200 : vector<2x128xf32>
    %202 = math.exp %201 : vector<2x128xf32>
    %cst_36 = arith.constant 1.000000e+00 : f32
    %203 = vector.broadcast %cst_36 : f32 to vector<2x128xf32>
    %204 = arith.addf %203, %202 : vector<2x128xf32>
    %205 = arith.divf %203, %204 : vector<2x128xf32>
    %206 = math.tanh %200 : vector<2x128xf32>
    %207 = vector.extract_strided_slice %205 {offsets = [0, 0], sizes = [2, 32], strides = [1, 1]} : vector<2x128xf32> to vector<2x32xf32>
    %208 = vector.extract_strided_slice %205 {offsets = [0, 32], sizes = [2, 32], strides = [1, 1]} : vector<2x128xf32> to vector<2x32xf32>
    %209 = vector.extract_strided_slice %206 {offsets = [0, 64], sizes = [2, 32], strides = [1, 1]} : vector<2x128xf32> to vector<2x32xf32>
    %210 = vector.extract_strided_slice %205 {offsets = [0, 96], sizes = [2, 32], strides = [1, 1]} : vector<2x128xf32> to vector<2x32xf32>
    %211 = arith.mulf %208, %176 : vector<2x32xf32>
    %212 = arith.mulf %207, %209 : vector<2x32xf32>
    %213 = arith.addf %211, %212 : vector<2x32xf32>
    %214 = math.tanh %213 : vector<2x32xf32>
    %215 = arith.mulf %210, %214 : vector<2x32xf32>
    %216 = tpu.concatenate %215, %197 in 1 : vector<2x32xf32>, vector<2x32xf32> -> vector<2x64xf32>
    %cst_37 = arith.constant dense<0.000000e+00> : vector<2x128xf32>
    %217 = tpu.matmul %216, %1, %cst_37 {dimension_numbers = #tpu.dot_dimension_numbers<[1], [0], [0], [1], [0, 0, 1, 1], [], []>} : vector<2x64xf32>, vector<64x128xf32>, vector<2x128xf32> -> vector<2x128xf32>
    %218 = vector.broadcast %2 : vector<1x128xf32> to vector<2x128xf32>
    %219 = arith.addf %217, %218 : vector<2x128xf32>
    %220 = arith.negf %219 : vector<2x128xf32>
    %221 = math.exp %220 : vector<2x128xf32>
    %cst_38 = arith.constant 1.000000e+00 : f32
    %222 = vector.broadcast %cst_38 : f32 to vector<2x128xf32>
    %223 = arith.addf %222, %221 : vector<2x128xf32>
    %224 = arith.divf %222, %223 : vector<2x128xf32>
    %225 = math.tanh %219 : vector<2x128xf32>
    %226 = vector.extract_strided_slice %224 {offsets = [0, 0], sizes = [2, 32], strides = [1, 1]} : vector<2x128xf32> to vector<2x32xf32>
    %227 = vector.extract_strided_slice %224 {offsets = [0, 32], sizes = [2, 32], strides = [1, 1]} : vector<2x128xf32> to vector<2x32xf32>
    %228 = vector.extract_strided_slice %225 {offsets = [0, 64], sizes = [2, 32], strides = [1, 1]} : vector<2x128xf32> to vector<2x32xf32>
    %229 = vector.extract_strided_slice %224 {offsets = [0, 96], sizes = [2, 32], strides = [1, 1]} : vector<2x128xf32> to vector<2x32xf32>
    %230 = arith.mulf %227, %195 : vector<2x32xf32>
    %231 = arith.mulf %226, %228 : vector<2x32xf32>
    %232 = arith.addf %230, %231 : vector<2x32xf32>
    %233 = math.tanh %232 : vector<2x32xf32>
    %234 = arith.mulf %229, %233 : vector<2x32xf32>
    %cst_39 = arith.constant dense<0.000000e+00> : vector<2x128xf32>
    %235 = tpu.matmul %215, %0, %cst_39 {dimension_numbers = #tpu.dot_dimension_numbers<[1], [0], [0], [1], [0, 0, 1, 1], [], []>} : vector<2x32xf32>, vector<32x128xf32>, vector<2x128xf32> -> vector<2x128xf32>
    %236 = vector.extract_strided_slice %8 {offsets = [12, 0], sizes = [2, 128], strides = [1, 1]} : vector<16x128xf32> to vector<2x128xf32>
    %237 = arith.addf %235, %236 : vector<2x128xf32>
    %238 = arith.negf %237 : vector<2x128xf32>
    %239 = math.exp %238 : vector<2x128xf32>
    %cst_40 = arith.constant 1.000000e+00 : f32
    %240 = vector.broadcast %cst_40 : f32 to vector<2x128xf32>
    %241 = arith.addf %240, %239 : vector<2x128xf32>
    %242 = arith.divf %240, %241 : vector<2x128xf32>
    %243 = math.tanh %237 : vector<2x128xf32>
    %244 = vector.extract_strided_slice %242 {offsets = [0, 0], sizes = [2, 32], strides = [1, 1]} : vector<2x128xf32> to vector<2x32xf32>
    %245 = vector.extract_strided_slice %242 {offsets = [0, 32], sizes = [2, 32], strides = [1, 1]} : vector<2x128xf32> to vector<2x32xf32>
    %246 = vector.extract_strided_slice %243 {offsets = [0, 64], sizes = [2, 32], strides = [1, 1]} : vector<2x128xf32> to vector<2x32xf32>
    %247 = vector.extract_strided_slice %242 {offsets = [0, 96], sizes = [2, 32], strides = [1, 1]} : vector<2x128xf32> to vector<2x32xf32>
    %248 = arith.mulf %245, %213 : vector<2x32xf32>
    %249 = arith.mulf %244, %246 : vector<2x32xf32>
    %250 = arith.addf %248, %249 : vector<2x32xf32>
    %251 = math.tanh %250 : vector<2x32xf32>
    %252 = arith.mulf %247, %251 : vector<2x32xf32>
    %253 = tpu.concatenate %252, %234 in 1 : vector<2x32xf32>, vector<2x32xf32> -> vector<2x64xf32>
    %cst_41 = arith.constant dense<0.000000e+00> : vector<2x128xf32>
    %254 = tpu.matmul %253, %1, %cst_41 {dimension_numbers = #tpu.dot_dimension_numbers<[1], [0], [0], [1], [0, 0, 1, 1], [], []>} : vector<2x64xf32>, vector<64x128xf32>, vector<2x128xf32> -> vector<2x128xf32>
    %255 = vector.broadcast %2 : vector<1x128xf32> to vector<2x128xf32>
    %256 = arith.addf %254, %255 : vector<2x128xf32>
    %257 = arith.negf %256 : vector<2x128xf32>
    %258 = math.exp %257 : vector<2x128xf32>
    %cst_42 = arith.constant 1.000000e+00 : f32
    %259 = vector.broadcast %cst_42 : f32 to vector<2x128xf32>
    %260 = arith.addf %259, %258 : vector<2x128xf32>
    %261 = arith.divf %259, %260 : vector<2x128xf32>
    %262 = math.tanh %256 : vector<2x128xf32>
    %263 = vector.extract_strided_slice %261 {offsets = [0, 0], sizes = [2, 32], strides = [1, 1]} : vector<2x128xf32> to vector<2x32xf32>
    %264 = vector.extract_strided_slice %261 {offsets = [0, 32], sizes = [2, 32], strides = [1, 1]} : vector<2x128xf32> to vector<2x32xf32>
    %265 = vector.extract_strided_slice %262 {offsets = [0, 64], sizes = [2, 32], strides = [1, 1]} : vector<2x128xf32> to vector<2x32xf32>
    %266 = vector.extract_strided_slice %261 {offsets = [0, 96], sizes = [2, 32], strides = [1, 1]} : vector<2x128xf32> to vector<2x32xf32>
    %267 = arith.mulf %264, %232 : vector<2x32xf32>
    %268 = arith.mulf %263, %265 : vector<2x32xf32>
    %269 = arith.addf %267, %268 : vector<2x32xf32>
    %270 = math.tanh %269 : vector<2x32xf32>
    %271 = arith.mulf %266, %270 : vector<2x32xf32>
    %cst_43 = arith.constant dense<0.000000e+00> : vector<2x128xf32>
    %272 = tpu.matmul %252, %0, %cst_43 {dimension_numbers = #tpu.dot_dimension_numbers<[1], [0], [0], [1], [0, 0, 1, 1], [], []>} : vector<2x32xf32>, vector<32x128xf32>, vector<2x128xf32> -> vector<2x128xf32>
    %273 = vector.extract_strided_slice %8 {offsets = [14, 0], sizes = [2, 128], strides = [1, 1]} : vector<16x128xf32> to vector<2x128xf32>
    %274 = arith.addf %272, %273 : vector<2x128xf32>
    %275 = arith.negf %274 : vector<2x128xf32>
    %276 = math.exp %275 : vector<2x128xf32>
    %cst_44 = arith.constant 1.000000e+00 : f32
    %277 = vector.broadcast %cst_44 : f32 to vector<2x128xf32>
    %278 = arith.addf %277, %276 : vector<2x128xf32>
    %279 = arith.divf %277, %278 : vector<2x128xf32>
    %280 = math.tanh %274 : vector<2x128xf32>
    %281 = vector.extract_strided_slice %279 {offsets = [0, 0], sizes = [2, 32], strides = [1, 1]} : vector<2x128xf32> to vector<2x32xf32>
    %282 = vector.extract_strided_slice %279 {offsets = [0, 32], sizes = [2, 32], strides = [1, 1]} : vector<2x128xf32> to vector<2x32xf32>
    %283 = vector.extract_strided_slice %280 {offsets = [0, 64], sizes = [2, 32], strides = [1, 1]} : vector<2x128xf32> to vector<2x32xf32>
    %284 = vector.extract_strided_slice %279 {offsets = [0, 96], sizes = [2, 32], strides = [1, 1]} : vector<2x128xf32> to vector<2x32xf32>
    %285 = arith.mulf %282, %250 : vector<2x32xf32>
    %286 = arith.mulf %281, %283 : vector<2x32xf32>
    %287 = arith.addf %285, %286 : vector<2x32xf32>
    %288 = math.tanh %287 : vector<2x32xf32>
    %289 = arith.mulf %284, %288 : vector<2x32xf32>
    %290 = tpu.concatenate %289, %271 in 1 : vector<2x32xf32>, vector<2x32xf32> -> vector<2x64xf32>
    %cst_45 = arith.constant dense<0.000000e+00> : vector<2x128xf32>
    %291 = tpu.matmul %290, %1, %cst_45 {dimension_numbers = #tpu.dot_dimension_numbers<[1], [0], [0], [1], [0, 0, 1, 1], [], []>} : vector<2x64xf32>, vector<64x128xf32>, vector<2x128xf32> -> vector<2x128xf32>
    %292 = vector.broadcast %2 : vector<1x128xf32> to vector<2x128xf32>
    %293 = arith.addf %291, %292 : vector<2x128xf32>
    %294 = arith.negf %293 : vector<2x128xf32>
    %295 = math.exp %294 : vector<2x128xf32>
    %cst_46 = arith.constant 1.000000e+00 : f32
    %296 = vector.broadcast %cst_46 : f32 to vector<2x128xf32>
    %297 = arith.addf %296, %295 : vector<2x128xf32>
    %298 = arith.divf %296, %297 : vector<2x128xf32>
    %299 = math.tanh %293 : vector<2x128xf32>
    %300 = vector.extract_strided_slice %298 {offsets = [0, 0], sizes = [2, 32], strides = [1, 1]} : vector<2x128xf32> to vector<2x32xf32>
    %301 = vector.extract_strided_slice %298 {offsets = [0, 32], sizes = [2, 32], strides = [1, 1]} : vector<2x128xf32> to vector<2x32xf32>
    %302 = vector.extract_strided_slice %299 {offsets = [0, 64], sizes = [2, 32], strides = [1, 1]} : vector<2x128xf32> to vector<2x32xf32>
    %303 = vector.extract_strided_slice %298 {offsets = [0, 96], sizes = [2, 32], strides = [1, 1]} : vector<2x128xf32> to vector<2x32xf32>
    %304 = arith.mulf %301, %269 : vector<2x32xf32>
    %305 = arith.mulf %300, %302 : vector<2x32xf32>
    %306 = arith.addf %304, %305 : vector<2x32xf32>
    %307 = math.tanh %306 : vector<2x32xf32>
    %308 = arith.mulf %303, %307 : vector<2x32xf32>
    %309 = tpu.concatenate %49, %86, %123, %160, %197, %234, %271, %308 in 0 : vector<2x32xf32>, vector<2x32xf32>, vector<2x32xf32>, vector<2x32xf32>, vector<2x32xf32>, vector<2x32xf32>, vector<2x32xf32>, vector<2x32xf32> -> vector<16x32xf32>
    %c0_47 = arith.constant 0 : index
    %c0_48 = arith.constant 0 : index
    %310 = vector.load %arg6[%c0_47, %c0_48] : memref<32x32xf32, #tpu.memory_space<vmem>>, vector<32x32xf32>
    %cst_49 = arith.constant dense<0.000000e+00> : vector<16x32xf32>
    %311 = tpu.matmul %309, %310, %cst_49 {dimension_numbers = #tpu.dot_dimension_numbers<[1], [0], [0], [1], [0, 0, 1, 1], [], []>} : vector<16x32xf32>, vector<32x32xf32>, vector<16x32xf32> -> vector<16x32xf32>
    %c0_50 = arith.constant 0 : index
    %c0_51 = arith.constant 0 : index
    %312 = vector.load %arg7[%c0_50, %c0_51] : memref<1x32xf32, #tpu.memory_space<vmem>>, vector<1x32xf32>
    %313 = vector.broadcast %312 : vector<1x32xf32> to vector<16x32xf32>
    %314 = arith.addf %311, %313 : vector<16x32xf32>
    %315 = math.tanh %314 : vector<16x32xf32>
    %c0_52 = arith.constant 0 : index
    %c0_53 = arith.constant 0 : index
    %316 = vector.load %arg8[%c0_52, %c0_53] : memref<32x1xf32, #tpu.memory_space<vmem>>, vector<32x1xf32>
    %cst_54 = arith.constant dense<0.000000e+00> : vector<16x1xf32>
    %317 = tpu.matmul %315, %316, %cst_54 {dimension_numbers = #tpu.dot_dimension_numbers<[1], [0], [0], [1], [0, 0, 1, 1], [], []>} : vector<16x32xf32>, vector<32x1xf32>, vector<16x1xf32> -> vector<16x1xf32>
    %318 = vector.shape_cast %317 : vector<16x1xf32> to vector<8x2x1xf32>
    %cst_55 = arith.constant dense<0xFF800000> : vector<2x1xf32>
    %319 = vector.multi_reduction <maximumf>, %318, %cst_55 [0] : vector<8x2x1xf32> to vector<2x1xf32>
    %320 = vector.shape_cast %319 : vector<2x1xf32> to vector<1x2x1xf32>
    %321 = vector.broadcast %320 : vector<1x2x1xf32> to vector<8x2x1xf32>
    %322 = arith.subf %318, %321 : vector<8x2x1xf32>
    %323 = math.exp %322 : vector<8x2x1xf32>
    %cst_56 = arith.constant dense<0.000000e+00> : vector<2x1xf32>
    %324 = vector.multi_reduction <add>, %323, %cst_56 [0] : vector<8x2x1xf32> to vector<2x1xf32>
    %325 = vector.shape_cast %324 : vector<2x1xf32> to vector<1x2x1xf32>
    %326 = vector.broadcast %325 : vector<1x2x1xf32> to vector<8x2x1xf32>
    %327 = arith.divf %323, %326 : vector<8x2x1xf32>
    %cst_57 = arith.constant 0.000000e+00 : f32
    %328 = vector.broadcast %cst_57 : f32 to vector<2x32xf32>
    %329 = vector.extract_strided_slice %327 {offsets = [0, 0, 0], sizes = [1, 2, 1], strides = [1, 1, 1]} : vector<8x2x1xf32> to vector<1x2x1xf32>
    %330 = vector.shape_cast %329 : vector<1x2x1xf32> to vector<2x1xf32>
    %331 = vector.broadcast %330 : vector<2x1xf32> to vector<2x32xf32>
    %332 = arith.mulf %49, %331 : vector<2x32xf32>
    %333 = arith.addf %328, %332 : vector<2x32xf32>
    %334 = vector.extract_strided_slice %327 {offsets = [1, 0, 0], sizes = [1, 2, 1], strides = [1, 1, 1]} : vector<8x2x1xf32> to vector<1x2x1xf32>
    %335 = vector.shape_cast %334 : vector<1x2x1xf32> to vector<2x1xf32>
    %336 = vector.broadcast %335 : vector<2x1xf32> to vector<2x32xf32>
    %337 = arith.mulf %86, %336 : vector<2x32xf32>
    %338 = arith.addf %333, %337 : vector<2x32xf32>
    %339 = vector.extract_strided_slice %327 {offsets = [2, 0, 0], sizes = [1, 2, 1], strides = [1, 1, 1]} : vector<8x2x1xf32> to vector<1x2x1xf32>
    %340 = vector.shape_cast %339 : vector<1x2x1xf32> to vector<2x1xf32>
    %341 = vector.broadcast %340 : vector<2x1xf32> to vector<2x32xf32>
    %342 = arith.mulf %123, %341 : vector<2x32xf32>
    %343 = arith.addf %338, %342 : vector<2x32xf32>
    %344 = vector.extract_strided_slice %327 {offsets = [3, 0, 0], sizes = [1, 2, 1], strides = [1, 1, 1]} : vector<8x2x1xf32> to vector<1x2x1xf32>
    %345 = vector.shape_cast %344 : vector<1x2x1xf32> to vector<2x1xf32>
    %346 = vector.broadcast %345 : vector<2x1xf32> to vector<2x32xf32>
    %347 = arith.mulf %160, %346 : vector<2x32xf32>
    %348 = arith.addf %343, %347 : vector<2x32xf32>
    %349 = vector.extract_strided_slice %327 {offsets = [4, 0, 0], sizes = [1, 2, 1], strides = [1, 1, 1]} : vector<8x2x1xf32> to vector<1x2x1xf32>
    %350 = vector.shape_cast %349 : vector<1x2x1xf32> to vector<2x1xf32>
    %351 = vector.broadcast %350 : vector<2x1xf32> to vector<2x32xf32>
    %352 = arith.mulf %197, %351 : vector<2x32xf32>
    %353 = arith.addf %348, %352 : vector<2x32xf32>
    %354 = vector.extract_strided_slice %327 {offsets = [5, 0, 0], sizes = [1, 2, 1], strides = [1, 1, 1]} : vector<8x2x1xf32> to vector<1x2x1xf32>
    %355 = vector.shape_cast %354 : vector<1x2x1xf32> to vector<2x1xf32>
    %356 = vector.broadcast %355 : vector<2x1xf32> to vector<2x32xf32>
    %357 = arith.mulf %234, %356 : vector<2x32xf32>
    %358 = arith.addf %353, %357 : vector<2x32xf32>
    %359 = vector.extract_strided_slice %327 {offsets = [6, 0, 0], sizes = [1, 2, 1], strides = [1, 1, 1]} : vector<8x2x1xf32> to vector<1x2x1xf32>
    %360 = vector.shape_cast %359 : vector<1x2x1xf32> to vector<2x1xf32>
    %361 = vector.broadcast %360 : vector<2x1xf32> to vector<2x32xf32>
    %362 = arith.mulf %271, %361 : vector<2x32xf32>
    %363 = arith.addf %358, %362 : vector<2x32xf32>
    %364 = vector.extract_strided_slice %327 {offsets = [7, 0, 0], sizes = [1, 2, 1], strides = [1, 1, 1]} : vector<8x2x1xf32> to vector<1x2x1xf32>
    %365 = vector.shape_cast %364 : vector<1x2x1xf32> to vector<2x1xf32>
    %366 = vector.broadcast %365 : vector<2x1xf32> to vector<2x32xf32>
    %367 = arith.mulf %308, %366 : vector<2x32xf32>
    %368 = arith.addf %363, %367 : vector<2x32xf32>
    %c0_58 = arith.constant 0 : index
    %c0_59 = arith.constant 0 : index
    %369 = vector.load %arg9[%c0_58, %c0_59] : memref<32x16xf32, #tpu.memory_space<vmem>>, vector<32x16xf32>
    %cst_60 = arith.constant dense<0.000000e+00> : vector<2x16xf32>
    %370 = tpu.matmul %368, %369, %cst_60 {dimension_numbers = #tpu.dot_dimension_numbers<[1], [0], [0], [1], [0, 0, 1, 1], [], []>} : vector<2x32xf32>, vector<32x16xf32>, vector<2x16xf32> -> vector<2x16xf32>
    %c0_61 = arith.constant 0 : index
    %c0_62 = arith.constant 0 : index
    %371 = vector.load %arg10[%c0_61, %c0_62] : memref<1x16xf32, #tpu.memory_space<vmem>>, vector<1x16xf32>
    %372 = vector.broadcast %371 : vector<1x16xf32> to vector<2x16xf32>
    %373 = arith.addf %370, %372 : vector<2x16xf32>
    %cst_63 = arith.constant 0.000000e+00 : f32
    %374 = vector.broadcast %cst_63 : f32 to vector<2x16xf32>
    %375 = arith.maximumf %373, %374 : vector<2x16xf32>
    %c0_64 = arith.constant 0 : index
    %c0_65 = arith.constant 0 : index
    %376 = vector.load %arg11[%c0_64, %c0_65] : memref<16x3xf32, #tpu.memory_space<vmem>>, vector<16x3xf32>
    %cst_66 = arith.constant dense<0.000000e+00> : vector<2x3xf32>
    %377 = tpu.matmul %375, %376, %cst_66 {dimension_numbers = #tpu.dot_dimension_numbers<[1], [0], [0], [1], [0, 0, 1, 1], [], []>} : vector<2x16xf32>, vector<16x3xf32>, vector<2x3xf32> -> vector<2x3xf32>
    %c0_67 = arith.constant 0 : index
    %c0_68 = arith.constant 0 : index
    %378 = vector.load %arg12[%c0_67, %c0_68] : memref<1x3xf32, #tpu.memory_space<vmem>>, vector<1x3xf32>
    %379 = vector.broadcast %378 : vector<1x3xf32> to vector<2x3xf32>
    %380 = arith.addf %377, %379 : vector<2x3xf32>
    %c0_69 = arith.constant 0 : index
    %c0_70 = arith.constant 0 : index
    %381 = vector.load %arg13[%c0_69, %c0_70] : memref<2x3xf32, #tpu.memory_space<vmem>>, vector<2x3xf32>
    tpu.vector_store %arg13[%c0_69, %c0_70], %380 {strides = array<i32>} : memref<2x3xf32, #tpu.memory_space<vmem>>, vector<2x3xf32>,
    return
  }
}

</mosaic_0001>

<llo_original>
// kernel: tpu_custom_call.1
$region0: #{tpu_custom_call.1}
  #allocation0 [shape = 'u32[]', space=smem, size = 0x4, offset = 0x4, fixed_abs, tag = 'smem constant byte address 0x4 - core index']
  #allocation1 [shape = 'u32[72,128]{1,0:T(1,128)}', space=vmem, size = 0x9000, scoped, tag = 'internal scratch']
  %s0 = inlined_call_operand.vmem [shape: f32[16,4], index: 0, kind: input, shape index: {}]
  %s1 = inlined_call_operand.vmem [shape: f32[4,128], index: 1, kind: input, shape index: {}]
  %s2 = inlined_call_operand.vmem [shape: f32[32,128], index: 2, kind: input, shape index: {}]
  %s3 = inlined_call_operand.vmem [shape: f32[1,128], index: 3, kind: input, shape index: {}]
  %s4 = inlined_call_operand.vmem [shape: f32[64,128], index: 4, kind: input, shape index: {}]
  %s5 = inlined_call_operand.vmem [shape: f32[1,128], index: 5, kind: input, shape index: {}]
  %s6 = inlined_call_operand.hbm [shape: f32[32,32], index: 6, kind: input, shape index: {}]
  %s7 = inlined_call_operand.vmem [shape: f32[1,32], index: 7, kind: input, shape index: {}]
  %s8 = inlined_call_operand.vmem [shape: f32[32,1], index: 8, kind: input, shape index: {}]
  %s9 = inlined_call_operand.vmem [shape: f32[32,16], index: 9, kind: input, shape index: {}]
  %s10 = inlined_call_operand.vmem [shape: f32[1,16], index: 10, kind: input, shape index: {}]
  %s11 = inlined_call_operand.vmem [shape: f32[16,3], index: 11, kind: input, shape index: {}]
  %s12 = inlined_call_operand.vmem [shape: f32[1,3], index: 12, kind: input, shape index: {}]
  %s13 = inlined_call_operand.hbm [shape: f32[2,3], index: 13, kind: output, shape index: {}]
  %s14 = sld [smem:[#allocation0]]
  $region66: #{tpu_custom_call.1} parent=0
    _
  %s16 = ssub.s32 1, %s14
  %s17 = scalar_select 0, %s16, %s14
  $region1: #{tpu_custom_call.1} parent=0
    #allocation2 [shape = 'u8[16384]{0}', space=vmem, size = 0x4000, scoped, tag = 'input window, operand 6, single buffered']
    #allocation3 [shape = 's32[1]{0}', space=sflag, size = 0x4, scoped, tag = 'scoped memory for tpu_custom_call.1']
    #allocation4 [shape = 's32[1]{0}', space=sflag, size = 0x4, scoped, tag = 'scoped memory for tpu_custom_call.1']
    #allocation5 [shape = 'u8[1024]{0}', space=vmem, size = 0x400, scoped, tag = 'output window, operand 0, single buffered']
    %18 = vsyncpa [#allocation3], 0
    %19 = vsyncpa [#allocation4], 0
    // Predicated region
    $region2: #{tpu_custom_call.1} parent=1 // pred_check
      _
    $region3: #{tpu_custom_call.1} parent=1 // pred_check_branch
      %21 = sbr.rel (0) target = $region5
    $region4: #{tpu_custom_call.1} parent=1 // pred_region
      _
    $region5: #{tpu_custom_call.1} parent=1 // pred_fallthru
      _
    // Predicated region
    $region6: #{tpu_custom_call.1} parent=1 // pred_check
      _
    $region7: #{tpu_custom_call.1} parent=1 // pred_check_branch
      %23 = sbr.rel (0) target = $region9
    $region8: #{tpu_custom_call.1} parent=1 // pred_region
      _
    $region9: #{tpu_custom_call.1} parent=1 // pred_fallthru
      _
    // Predicated region
    $region10: #{tpu_custom_call.1} parent=1 // pred_check
      _
    $region11: #{tpu_custom_call.1} parent=1 // pred_check_branch
      %25 = sbr.rel (0) target = $region13
    $region12: #{tpu_custom_call.1} parent=1 // pred_region
      _
    $region13: #{tpu_custom_call.1} parent=1 // pred_fallthru
      _
    // Predicated region
    $region14: #{tpu_custom_call.1} parent=1 // pred_check
      _
    $region15: #{tpu_custom_call.1} parent=1 // pred_check_branch
      %27 = sbr.rel (0) target = $region17
    $region16: #{tpu_custom_call.1} parent=1 // pred_region
      _
    $region17: #{tpu_custom_call.1} parent=1 // pred_fallthru
      _
    // Predicated region
    $region18: #{tpu_custom_call.1} parent=1 // pred_check
      _
    $region19: #{tpu_custom_call.1} parent=1 // pred_check_branch
      %29 = sbr.rel (0) target = $region21
    $region20: #{tpu_custom_call.1} parent=1 // pred_region
      _
    $region21: #{tpu_custom_call.1} parent=1 // pred_fallthru
      _
    // Predicated region
    $region22: #{tpu_custom_call.1} parent=1 // pred_check
      _
    $region23: #{tpu_custom_call.1} parent=1 // pred_check_branch
      %31 = sbr.rel (0) target = $region25
    $region24: #{tpu_custom_call.1} parent=1 // pred_region
      _
    $region25: #{tpu_custom_call.1} parent=1 // pred_fallthru
      _
    // Predicated region
    $region26: #{tpu_custom_call.1} parent=1 // pred_check
      _
    $region27: #{tpu_custom_call.1} parent=1 // pred_check_branch
      %33 = sbr.rel (0) target = $region29
    $region28: #{tpu_custom_call.1} parent=1 // pred_region
      %35 = vsyncadd [#allocation3], 0
      %s36 = sshll.u32 %s6, 4
      %s37 = int_to_ptr.hbm [resolvable:$true] %s36
      %s38 = sshll.u32 [#allocation2], 4
      %s39 = int_to_ptr.vmem [resolvable:$true] %s38
      %44 = dma.hbm_to_vmem [thread:$0]  %s37, 512, %s39, [#allocation3], 128, 128, 8
    $region29: #{tpu_custom_call.1} parent=1 // pred_fallthru
      _
    // Predicated region
    $region30: #{tpu_custom_call.1} parent=1 // pred_check
      _
    $region31: #{tpu_custom_call.1} parent=1 // pred_check_branch
      %46 = sbr.rel (0) target = $region33
    $region32: #{tpu_custom_call.1} parent=1 // pred_region
      _
    $region33: #{tpu_custom_call.1} parent=1 // pred_fallthru
      _
    // Predicated region
    $region34: #{tpu_custom_call.1} parent=1 // pred_check
      _
    $region35: #{tpu_custom_call.1} parent=1 // pred_check_branch
      %48 = sbr.rel (0) target = $region37
    $region36: #{tpu_custom_call.1} parent=1 // pred_region
      _
    $region37: #{tpu_custom_call.1} parent=1 // pred_fallthru
      _
    // Predicated region
    $region38: #{tpu_custom_call.1} parent=1 // pred_check
      _
    $region39: #{tpu_custom_call.1} parent=1 // pred_check_branch
      %50 = sbr.rel (0) target = $region41
    $region40: #{tpu_custom_call.1} parent=1 // pred_region
      _
    $region41: #{tpu_custom_call.1} parent=1 // pred_fallthru
      _
    // Predicated region
    $region42: #{tpu_custom_call.1} parent=1 // pred_check
      _
    $region43: #{tpu_custom_call.1} parent=1 // pred_check_branch
      %52 = sbr.rel (0) target = $region45
    $region44: #{tpu_custom_call.1} parent=1 // pred_region
      _
    $region45: #{tpu_custom_call.1} parent=1 // pred_fallthru
      _
    // Predicated region
    $region46: #{tpu_custom_call.1} parent=1 // pred_check
      _
    $region47: #{tpu_custom_call.1} parent=1 // pred_check_branch
      %54 = sbr.rel (0) target = $region49
    $region48: #{tpu_custom_call.1} parent=1 // pred_region
      _
    $region49: #{tpu_custom_call.1} parent=1 // pred_fallthru
      _
    // Predicated region
    $region50: #{tpu_custom_call.1} parent=1 // pred_check
      _
    $region51: #{tpu_custom_call.1} parent=1 // pred_check_branch
      %56 = sbr.rel (0) target = $region53
    $region52: #{tpu_custom_call.1} parent=1 // pred_region
      _
    $region53: #{tpu_custom_call.1} parent=1 // pred_fallthru
      _
    // Predicated region
    $region54: #{tpu_custom_call.1} parent=1 // pred_check
      _
    $region55: #{tpu_custom_call.1} parent=1 // pred_check_branch
      %58 = sbr.rel (0) target = $region57
    $region56: #{tpu_custom_call.1} parent=1 // pred_region
      %60 = dma.done [#allocation3], 512
    $region57: #{tpu_custom_call.1} parent=1 // pred_fallthru
      _
    %v61 = vld [vmem:[%s2] sm:$0xff]
    %v62 = vld [vmem:[%s2 + $0x8] sm:$0xff]
    %v63 = vld [vmem:[%s2 + $0x10] sm:$0xff]
    %v64 = vld [vmem:[%s2 + $0x18] sm:$0xff]
    %v65 = vld [vmem:[%s4] sm:$0xff]
    %v66 = vld [vmem:[%s4 + $0x8] sm:$0xff]
    %v67 = vld [vmem:[%s4 + $0x10] sm:$0xff]
    %v68 = vld [vmem:[%s4 + $0x18] sm:$0xff]
    %v69 = vld [vmem:[%s4 + $0x20] sm:$0xff]
    %v70 = vld [vmem:[%s4 + $0x28] sm:$0xff]
    %v71 = vld [vmem:[%s4 + $0x30] sm:$0xff]
    %v72 = vld [vmem:[%s4 + $0x38] sm:$0xff]
    %v73 = vld [vmem:[%s5] sm:$0x1]
    %v74 = vld [vmem:[%s0] sm:$0xff]
    %v75 = vld [vmem:[%s0 + $0x8] sm:$0xff]
    %v76 = vld [vmem:[%s1] sm:$0xf]
    %v77 = vld [vmem:[%s3] sm:$0x1]
    %v79 = vperm.slane %v77, 0
    %vm81 = vcmask 31744
    %v83 = vsel %vm81, %v74, 0
    %v86 = vsel %vm81, %v75, 0
    %vm88 = vcmask 1043456
    %v90 = vsel %vm88, %v76, 0
    %92 = vmatpush.msra.mxu0 0.0
    %93 = vmatpush.msra.mxu0 0.0
    %94 = vmatpush.msra.mxu0 0.0
    %95 = vmatpush.msra.mxu0 0.0
    %96 = vmatpush.msra.mxu0 0.0
    %97 = vmatpush.msra.mxu0 0.0
    %98 = vmatpush.msra.mxu0 0.0
    %99 = vmatpush.msra.mxu0 0.0
    %100 = vmatpush.msra.mxu0 0.0
    %101 = vmatpush.msra.mxu0 0.0
    %102 = vmatpush.msra.mxu0 0.0
    %103 = vmatpush.msra.mxu0 0.0
    %104 = vmatpush.msra.mxu0 0.0
    %105 = vmatpush.msra.mxu0 0.0
    %106 = vmatpush.msra.mxu0 0.0
    %107 = vmatpush.msra.mxu0 %v90
    %108 = vmatmul.f32.gmra.mxu0 %v83
    %v109 = vpop.f32.mrf.mxu0
    %v110 = vadd.f32 %v79, %v109
    %111 = vmatmul.f32.gmra.mxu0 %v86
    %v112 = vpop.f32.mrf.mxu0
    %v113 = vadd.f32 %v79, %v112
    %114 = vdwg.mxu0
    %vm115 = vcmask 261120
    %v117 = vsel %vm115, 0.0, 0
    %119 = vmatpush.msra.mxu0 0.0
    %120 = vmatpush.msra.mxu0 0.0
    %121 = vmatpush.msra.mxu0 0.0
    %122 = vmatpush.msra.mxu0 0.0
    %123 = vmatpush.msra.mxu0 0.0
    %124 = vmatpush.msra.mxu0 0.0
    %125 = vmatpush.msra.mxu0 0.0
    %126 = vmatpush.msra.mxu0 0.0
    %127 = vmatpush.msra.mxu0 0.0
    %128 = vmatpush.msra.mxu0 0.0
    %129 = vmatpush.msra.mxu0 0.0
    %130 = vmatpush.msra.mxu0 0.0
    %131 = vmatpush.msra.mxu0 %v64
    %132 = vmatpush.msra.mxu0 %v63
    %133 = vmatpush.msra.mxu0 %v62
    %134 = vmatpush.msra.mxu0 %v61
    %135 = vmatmul.f32.gmra.mxu0 %v117
    %v136 = vpop.f32.mrf.mxu0
    %v137 = vadd.f32 %v110, %v136
    %138 = vdwg.mxu0
    %v139 = vxor.u32 %v137, 2147483648
    %v140 = vmul.f32 %v139, 1.442695
    %v141 = vpow.pop %v140
    %v142 = vadd.f32 %v141, 1.0
    %v143 = vrcp.pop %v142
    %v144 = vmul.f32 %v142, %v143
    %v145 = vsub.f32 1.0, %v144
    %v146 = vmul.f32 %v143, %v145
    %v147 = vadd.f32 %v143, %v146
    %vm148 = vweird.f32 %v142
    %vm149 = vweird.f32 %v143
    %vm150 = vmor %vm148, %vm149
    %v151 = vsel %vm150, %v143, %v147
    %v152 = vand.u32 2147483647, %v142
    %vm153 = vcmp.eq.f32.partialorder %v152, 8.507059e+37
    %v154 = vand.u32 %v142, 2147483648
    %v155 = vor.u32 1.1754944e-38, %v154
    %v156 = vsel %vm153, %v155, %v151
    %v157 = vmul.f32 1.0, %v156
    %v158 = vtanh.pop %v137
    %v159 = vmul.f32 %v157, 0.0
    %161 = vrot.lane.b32.xlu0 %v158, 64
    %v162 = vpop.permute.xlu0 %161
    %v164 = vmul.f32 %v157, %v162
    %166 = vrot.lane.b32.xlu0 %v164, 32
    %v167 = vpop.permute.xlu0 %166
    %v169 = vadd.f32 %v159, %v167
    %v170 = vtanh.pop %v169
    %172 = vrot.lane.b32.xlu0 %v170, 64
    %v173 = vpop.permute.xlu0 %172
    %v175 = vmul.f32 %v157, %v173
    %177 = vrot.lane.b32.xlu0 %v175, 32
    %v178 = vpop.permute.xlu0 %177
    %v180 = vsel %vm115, %v178, 0.0
    %v182 = vperm.slane %v73, 0
    %vm184 = vcmask 523264
    %v186 = vsel %vm184, %v180, 0
    %188 = vmatpush.msra.mxu0 0.0
    %189 = vmatpush.msra.mxu0 0.0
    %190 = vmatpush.msra.mxu0 0.0
    %191 = vmatpush.msra.mxu0 0.0
    %192 = vmatpush.msra.mxu0 0.0
    %193 = vmatpush.msra.mxu0 0.0
    %194 = vmatpush.msra.mxu0 0.0
    %195 = vmatpush.msra.mxu0 0.0
    %196 = vmatpush.msra.mxu0 %v72
    %197 = vmatpush.msra.mxu0 %v71
    %198 = vmatpush.msra.mxu0 %v70
    %199 = vmatpush.msra.mxu0 %v69
    %200 = vmatpush.msra.mxu0 %v68
    %201 = vmatpush.msra.mxu0 %v67
    %202 = vmatpush.msra.mxu0 %v66
    %203 = vmatpush.msra.mxu0 %v65
    %204 = vmatmul.f32.gmra.mxu0 %v186
    %v205 = vpop.f32.mrf.mxu0
    %v206 = vadd.f32 %v182, %v205
    %207 = vdwg.mxu0
    %v208 = vxor.u32 %v206, 2147483648
    %v209 = vmul.f32 %v208, 1.442695
    %v210 = vpow.pop %v209
    %v211 = vadd.f32 %v210, 1.0
    %v212 = vrcp.pop %v211
    %v213 = vmul.f32 %v211, %v212
    %v214 = vsub.f32 1.0, %v213
    %v215 = vmul.f32 %v212, %v214
    %v216 = vadd.f32 %v212, %v215
    %vm217 = vweird.f32 %v211
    %vm218 = vweird.f32 %v212
    %vm219 = vmor %vm217, %vm218
    %v220 = vsel %vm219, %v212, %v216
    %v221 = vand.u32 2147483647, %v211
    %vm222 = vcmp.eq.f32.partialorder %v221, 8.507059e+37
    %v223 = vand.u32 %v211, 2147483648
    %v224 = vor.u32 1.1754944e-38, %v223
    %v225 = vsel %vm222, %v224, %v220
    %v226 = vmul.f32 1.0, %v225
    %v227 = vtanh.pop %v206
    %v228 = vmul.f32 %v226, 0.0
    %230 = vrot.lane.b32.xlu0 %v227, 64
    %v231 = vpop.permute.xlu0 %230
    %v233 = vmul.f32 %v226, %v231
    %235 = vrot.lane.b32.xlu0 %v233, 32
    %v236 = vpop.permute.xlu0 %235
    %v238 = vadd.f32 %v228, %v236
    %v239 = vtanh.pop %v238
    %241 = vrot.lane.b32.xlu0 %v239, 64
    %v242 = vpop.permute.xlu0 %241
    %v244 = vmul.f32 %v226, %v242
    %v246 = vrot.slane %v110, 2
    %v248 = vsel %vm115, %v178, 0
    %250 = vmatpush.msra.mxu0 0.0
    %251 = vmatpush.msra.mxu0 0.0
    %252 = vmatpush.msra.mxu0 0.0
    %253 = vmatpush.msra.mxu0 0.0
    %254 = vmatpush.msra.mxu0 0.0
    %255 = vmatpush.msra.mxu0 0.0
    %256 = vmatpush.msra.mxu0 0.0
    %257 = vmatpush.msra.mxu0 0.0
    %258 = vmatpush.msra.mxu0 0.0
    %259 = vmatpush.msra.mxu0 0.0
    %260 = vmatpush.msra.mxu0 0.0
    %261 = vmatpush.msra.mxu0 0.0
    %262 = vmatpush.msra.mxu0 %v64
    %263 = vmatpush.msra.mxu0 %v63
    %264 = vmatpush.msra.mxu0 %v62
    %265 = vmatpush.msra.mxu0 %v61
    %266 = vmatmul.f32.gmra.mxu0 %v248
    %v267 = vpop.f32.mrf.mxu0
    %v268 = vadd.f32 %v246, %v267
    %269 = vdwg.mxu0
    %v270 = vxor.u32 %v268, 2147483648
    %v271 = vmul.f32 %v270, 1.442695
    %v272 = vpow.pop %v271
    %v273 = vadd.f32 %v272, 1.0
    %v274 = vrcp.pop %v273
    %v275 = vmul.f32 %v273, %v274
    %v276 = vsub.f32 1.0, %v275
    %v277 = vmul.f32 %v274, %v276
    %v278 = vadd.f32 %v274, %v277
    %vm279 = vweird.f32 %v273
    %vm280 = vweird.f32 %v274
    %vm281 = vmor %vm279, %vm280
    %v282 = vsel %vm281, %v274, %v278
    %v283 = vand.u32 2147483647, %v273
    %vm284 = vcmp.eq.f32.partialorder %v283, 8.507059e+37
    %v285 = vand.u32 %v273, 2147483648
    %v286 = vor.u32 1.1754944e-38, %v285
    %v287 = vsel %vm284, %v286, %v282
    %v288 = vmul.f32 1.0, %v287
    %v289 = vtanh.pop %v268
    %v290 = vmul.f32 %v288, %v169
    %292 = vrot.lane.b32.xlu0 %v289, 64
    %v293 = vpop.permute.xlu0 %292
    %v295 = vmul.f32 %v288, %v293
    %297 = vrot.lane.b32.xlu0 %v295, 32
    %v298 = vpop.permute.xlu0 %297
    %v300 = vadd.f32 %v290, %v298
    %v301 = vtanh.pop %v300
    %303 = vrot.lane.b32.xlu0 %v301, 64
    %v304 = vpop.permute.xlu0 %303
    %v306 = vmul.f32 %v288, %v304
    %308 = vrot.lane.b32.xlu0 %v306, 32
    %v309 = vpop.permute.xlu0 %308
    %312 = vrot.lane.b32.xlu0 %v244, 64
    %v313 = vpop.permute.xlu0 %312
    %v315 = vsel %vm115, %v309, %v313
    %v317 = vsel %vm184, %v315, 0
    %319 = vmatpush.msra.mxu0 0.0
    %320 = vmatpush.msra.mxu0 0.0
    %321 = vmatpush.msra.mxu0 0.0
    %322 = vmatpush.msra.mxu0 0.0
    %323 = vmatpush.msra.mxu0 0.0
    %324 = vmatpush.msra.mxu0 0.0
    %325 = vmatpush.msra.mxu0 0.0
    %326 = vmatpush.msra.mxu0 0.0
    %327 = vmatpush.msra.mxu0 %v72
    %328 = vmatpush.msra.mxu0 %v71
    %329 = vmatpush.msra.mxu0 %v70
    %330 = vmatpush.msra.mxu0 %v69
    %331 = vmatpush.msra.mxu0 %v68
    %332 = vmatpush.msra.mxu0 %v67
    %333 = vmatpush.msra.mxu0 %v66
    %334 = vmatpush.msra.mxu0 %v65
    %335 = vmatmul.f32.gmra.mxu0 %v317
    %v336 = vpop.f32.mrf.mxu0
    %v337 = vadd.f32 %v182, %v336
    %338 = vdwg.mxu0
    %v339 = vxor.u32 %v337, 2147483648
    %v340 = vmul.f32 %v339, 1.442695
    %v341 = vpow.pop %v340
    %v342 = vadd.f32 %v341, 1.0
    %v343 = vrcp.pop %v342
    %v344 = vmul.f32 %v342, %v343
    %v345 = vsub.f32 1.0, %v344
    %v346 = vmul.f32 %v343, %v345
    %v347 = vadd.f32 %v343, %v346
    %vm348 = vweird.f32 %v342
    %vm349 = vweird.f32 %v343
    %vm350 = vmor %vm348, %vm349
    %v351 = vsel %vm350, %v343, %v347
    %v352 = vand.u32 2147483647, %v342
    %vm353 = vcmp.eq.f32.partialorder %v352, 8.507059e+37
    %v354 = vand.u32 %v342, 2147483648
    %v355 = vor.u32 1.1754944e-38, %v354
    %v356 = vsel %vm353, %v355, %v351
    %v357 = vmul.f32 1.0, %v356
    %v358 = vtanh.pop %v337
    %v359 = vmul.f32 %v357, %v238
    %361 = vrot.lane.b32.xlu0 %v358, 64
    %v362 = vpop.permute.xlu0 %361
    %v364 = vmul.f32 %v357, %v362
    %366 = vrot.lane.b32.xlu0 %v364, 32
    %v367 = vpop.permute.xlu0 %366
    %v369 = vadd.f32 %v359, %v367
    %v370 = vtanh.pop %v369
    %372 = vrot.lane.b32.xlu0 %v370, 64
    %v373 = vpop.permute.xlu0 %372
    %v375 = vmul.f32 %v357, %v373
    %v376 = vrot.slane %v110, 4
    %v378 = vsel %vm115, %v309, 0
    %380 = vmatpush.msra.mxu0 0.0
    %381 = vmatpush.msra.mxu0 0.0
    %382 = vmatpush.msra.mxu0 0.0
    %383 = vmatpush.msra.mxu0 0.0
    %384 = vmatpush.msra.mxu0 0.0
    %385 = vmatpush.msra.mxu0 0.0
    %386 = vmatpush.msra.mxu0 0.0
    %387 = vmatpush.msra.mxu0 0.0
    %388 = vmatpush.msra.mxu0 0.0
    %389 = vmatpush.msra.mxu0 0.0
    %390 = vmatpush.msra.mxu0 0.0
    %391 = vmatpush.msra.mxu0 0.0
    %392 = vmatpush.msra.mxu0 %v64
    %393 = vmatpush.msra.mxu0 %v63
    %394 = vmatpush.msra.mxu0 %v62
    %395 = vmatpush.msra.mxu0 %v61
    %396 = vmatmul.f32.gmra.mxu0 %v378
    %v397 = vpop.f32.mrf.mxu0
    %v398 = vadd.f32 %v376, %v397
    %399 = vdwg.mxu0
    %v400 = vxor.u32 %v398, 2147483648
    %v401 = vmul.f32 %v400, 1.442695
    %v402 = vpow.pop %v401
    %v403 = vadd.f32 %v402, 1.0
    %v404 = vrcp.pop %v403
    %v405 = vmul.f32 %v403, %v404
    %v406 = vsub.f32 1.0, %v405
    %v407 = vmul.f32 %v404, %v406
    %v408 = vadd.f32 %v404, %v407
    %vm409 = vweird.f32 %v403
    %vm410 = vweird.f32 %v404
    %vm411 = vmor %vm409, %vm410
    %v412 = vsel %vm411, %v404, %v408
    %v413 = vand.u32 2147483647, %v403
    %vm414 = vcmp.eq.f32.partialorder %v413, 8.507059e+37
    %v415 = vand.u32 %v403, 2147483648
    %v416 = vor.u32 1.1754944e-38, %v415
    %v417 = vsel %vm414, %v416, %v412
    %v418 = vmul.f32 1.0, %v417
    %v419 = vtanh.pop %v398
    %v420 = vmul.f32 %v418, %v300
    %422 = vrot.lane.b32.xlu0 %v419, 64
    %v423 = vpop.permute.xlu0 %422
    %v425 = vmul.f32 %v418, %v423
    %427 = vrot.lane.b32.xlu0 %v425, 32
    %v428 = vpop.permute.xlu0 %427
    %v430 = vadd.f32 %v420, %v428
    %v431 = vtanh.pop %v430
    %433 = vrot.lane.b32.xlu0 %v431, 64
    %v434 = vpop.permute.xlu0 %433
    %v436 = vmul.f32 %v418, %v434
    %438 = vrot.lane.b32.xlu0 %v436, 32
    %v439 = vpop.permute.xlu0 %438
    %442 = vrot.lane.b32.xlu0 %v375, 64
    %v443 = vpop.permute.xlu0 %442
    %v445 = vsel %vm115, %v439, %v443
    %v447 = vsel %vm184, %v445, 0
    %449 = vmatpush.msra.mxu0 0.0
    %450 = vmatpush.msra.mxu0 0.0
    %451 = vmatpush.msra.mxu0 0.0
    %452 = vmatpush.msra.mxu0 0.0
    %453 = vmatpush.msra.mxu0 0.0
    %454 = vmatpush.msra.mxu0 0.0
    %455 = vmatpush.msra.mxu0 0.0
    %456 = vmatpush.msra.mxu0 0.0
    %457 = vmatpush.msra.mxu0 %v72
    %458 = vmatpush.msra.mxu0 %v71
    %459 = vmatpush.msra.mxu0 %v70
    %460 = vmatpush.msra.mxu0 %v69
    %461 = vmatpush.msra.mxu0 %v68
    %462 = vmatpush.msra.mxu0 %v67
    %463 = vmatpush.msra.mxu0 %v66
    %464 = vmatpush.msra.mxu0 %v65
    %465 = vmatmul.f32.gmra.mxu0 %v447
    %v466 = vpop.f32.mrf.mxu0
    %v467 = vadd.f32 %v182, %v466
    %468 = vdwg.mxu0
    %v469 = vxor.u32 %v467, 2147483648
    %v470 = vmul.f32 %v469, 1.442695
    %v471 = vpow.pop %v470
    %v472 = vadd.f32 %v471, 1.0
    %v473 = vrcp.pop %v472
    %v474 = vmul.f32 %v472, %v473
    %v475 = vsub.f32 1.0, %v474
    %v476 = vmul.f32 %v473, %v475
    %v477 = vadd.f32 %v473, %v476
    %vm478 = vweird.f32 %v472
    %vm479 = vweird.f32 %v473
    %vm480 = vmor %vm478, %vm479
    %v481 = vsel %vm480, %v473, %v477
    %v482 = vand.u32 2147483647, %v472
    %vm483 = vcmp.eq.f32.partialorder %v482, 8.507059e+37
    %v484 = vand.u32 %v472, 2147483648
    %v485 = vor.u32 1.1754944e-38, %v484
    %v486 = vsel %vm483, %v485, %v481
    %v487 = vmul.f32 1.0, %v486
    %v488 = vtanh.pop %v467
    %v489 = vmul.f32 %v487, %v369
    %491 = vrot.lane.b32.xlu0 %v488, 64
    %v492 = vpop.permute.xlu0 %491
    %v494 = vmul.f32 %v487, %v492
    %496 = vrot.lane.b32.xlu0 %v494, 32
    %v497 = vpop.permute.xlu0 %496
    %v499 = vadd.f32 %v489, %v497
    %v500 = vtanh.pop %v499
    %502 = vrot.lane.b32.xlu0 %v500, 64
    %v503 = vpop.permute.xlu0 %502
    %v505 = vmul.f32 %v487, %v503
    %v506 = vrot.slane %v110, 6
    %v508 = vsel %vm115, %v439, 0
    %510 = vmatpush.msra.mxu0 0.0
    %511 = vmatpush.msra.mxu0 0.0
    %512 = vmatpush.msra.mxu0 0.0
    %513 = vmatpush.msra.mxu0 0.0
    %514 = vmatpush.msra.mxu0 0.0
    %515 = vmatpush.msra.mxu0 0.0
    %516 = vmatpush.msra.mxu0 0.0
    %517 = vmatpush.msra.mxu0 0.0
    %518 = vmatpush.msra.mxu0 0.0
    %519 = vmatpush.msra.mxu0 0.0
    %520 = vmatpush.msra.mxu0 0.0
    %521 = vmatpush.msra.mxu0 0.0
    %522 = vmatpush.msra.mxu0 %v64
    %523 = vmatpush.msra.mxu0 %v63
    %524 = vmatpush.msra.mxu0 %v62
    %525 = vmatpush.msra.mxu0 %v61
    %526 = vmatmul.f32.gmra.mxu0 %v508
    %v527 = vpop.f32.mrf.mxu0
    %v528 = vadd.f32 %v506, %v527
    %529 = vdwg.mxu0
    %v530 = vxor.u32 %v528, 2147483648
    %v531 = vmul.f32 %v530, 1.442695
    %v532 = vpow.pop %v531
    %v533 = vadd.f32 %v532, 1.0
    %v534 = vrcp.pop %v533
    %v535 = vmul.f32 %v533, %v534
    %v536 = vsub.f32 1.0, %v535
    %v537 = vmul.f32 %v534, %v536
    %v538 = vadd.f32 %v534, %v537
    %vm539 = vweird.f32 %v533
    %vm540 = vweird.f32 %v534
    %vm541 = vmor %vm539, %vm540
    %v542 = vsel %vm541, %v534, %v538
    %v543 = vand.u32 2147483647, %v533
    %vm544 = vcmp.eq.f32.partialorder %v543, 8.507059e+37
    %v545 = vand.u32 %v533, 2147483648
    %v546 = vor.u32 1.1754944e-38, %v545
    %v547 = vsel %vm544, %v546, %v542
    %v548 = vmul.f32 1.0, %v547
    %v549 = vtanh.pop %v528
    %v550 = vmul.f32 %v548, %v430
    %552 = vrot.lane.b32.xlu0 %v549, 64
    %v553 = vpop.permute.xlu0 %552
    %v555 = vmul.f32 %v548, %v553
    %557 = vrot.lane.b32.xlu0 %v555, 32
    %v558 = vpop.permute.xlu0 %557
    %v560 = vadd.f32 %v550, %v558
    %v561 = vtanh.pop %v560
    %563 = vrot.lane.b32.xlu0 %v561, 64
    %v564 = vpop.permute.xlu0 %563
    %v566 = vmul.f32 %v548, %v564
    %568 = vrot.lane.b32.xlu0 %v566, 32
    %v569 = vpop.permute.xlu0 %568
    %572 = vrot.lane.b32.xlu0 %v505, 64
    %v573 = vpop.permute.xlu0 %572
    %v575 = vsel %vm115, %v569, %v573
    %v577 = vsel %vm184, %v575, 0
    %579 = vmatpush.msra.mxu0 0.0
    %580 = vmatpush.msra.mxu0 0.0
    %581 = vmatpush.msra.mxu0 0.0
    %582 = vmatpush.msra.mxu0 0.0
    %583 = vmatpush.msra.mxu0 0.0
    %584 = vmatpush.msra.mxu0 0.0
    %585 = vmatpush.msra.mxu0 0.0
    %586 = vmatpush.msra.mxu0 0.0
    %587 = vmatpush.msra.mxu0 %v72
    %588 = vmatpush.msra.mxu0 %v71
    %589 = vmatpush.msra.mxu0 %v70
    %590 = vmatpush.msra.mxu0 %v69
    %591 = vmatpush.msra.mxu0 %v68
    %592 = vmatpush.msra.mxu0 %v67
    %593 = vmatpush.msra.mxu0 %v66
    %594 = vmatpush.msra.mxu0 %v65
    %595 = vmatmul.f32.gmra.mxu0 %v577
    %v596 = vpop.f32.mrf.mxu0
    %v597 = vadd.f32 %v182, %v596
    %598 = vdwg.mxu0
    %v599 = vxor.u32 %v597, 2147483648
    %v600 = vmul.f32 %v599, 1.442695
    %v601 = vpow.pop %v600
    %v602 = vadd.f32 %v601, 1.0
    %v603 = vrcp.pop %v602
    %v604 = vmul.f32 %v602, %v603
    %v605 = vsub.f32 1.0, %v604
    %v606 = vmul.f32 %v603, %v605
    %v607 = vadd.f32 %v603, %v606
    %vm608 = vweird.f32 %v602
    %vm609 = vweird.f32 %v603
    %vm610 = vmor %vm608, %vm609
    %v611 = vsel %vm610, %v603, %v607
    %v612 = vand.u32 2147483647, %v602
    %vm613 = vcmp.eq.f32.partialorder %v612, 8.507059e+37
    %v614 = vand.u32 %v602, 2147483648
    %v615 = vor.u32 1.1754944e-38, %v614
    %v616 = vsel %vm613, %v615, %v611
    %v617 = vmul.f32 1.0, %v616
    %v618 = vtanh.pop %v597
    %v619 = vmul.f32 %v617, %v499
    %621 = vrot.lane.b32.xlu0 %v618, 64
    %v622 = vpop.permute.xlu0 %621
    %v624 = vmul.f32 %v617, %v622
    %626 = vrot.lane.b32.xlu0 %v624, 32
    %v627 = vpop.permute.xlu0 %626
    %v629 = vadd.f32 %v619, %v627
    %v630 = vtanh.pop %v629
    %632 = vrot.lane.b32.xlu0 %v630, 64
    %v633 = vpop.permute.xlu0 %632
    %v635 = vmul.f32 %v617, %v633
    %v636 = vsel %vm115, %v569, 0
    %638 = vmatpush.msra.mxu0 0.0
    %639 = vmatpush.msra.mxu0 0.0
    %640 = vmatpush.msra.mxu0 0.0
    %641 = vmatpush.msra.mxu0 0.0
    %642 = vmatpush.msra.mxu0 0.0
    %643 = vmatpush.msra.mxu0 0.0
    %644 = vmatpush.msra.mxu0 0.0
    %645 = vmatpush.msra.mxu0 0.0
    %646 = vmatpush.msra.mxu0 0.0
    %647 = vmatpush.msra.mxu0 0.0
    %648 = vmatpush.msra.mxu0 0.0
    %649 = vmatpush.msra.mxu0 0.0
    %650 = vmatpush.msra.mxu0 %v64
    %651 = vmatpush.msra.mxu0 %v63
    %652 = vmatpush.msra.mxu0 %v62
    %653 = vmatpush.msra.mxu0 %v61
    %654 = vmatmul.f32.gmra.mxu0 %v636
    %v655 = vpop.f32.mrf.mxu0
    %v656 = vadd.f32 %v113, %v655
    %657 = vdwg.mxu0
    %v658 = vxor.u32 %v656, 2147483648
    %v659 = vmul.f32 %v658, 1.442695
    %v660 = vpow.pop %v659
    %v661 = vadd.f32 %v660, 1.0
    %v662 = vrcp.pop %v661
    %v663 = vmul.f32 %v661, %v662
    %v664 = vsub.f32 1.0, %v663
    %v665 = vmul.f32 %v662, %v664
    %v666 = vadd.f32 %v662, %v665
    %vm667 = vweird.f32 %v661
    %vm668 = vweird.f32 %v662
    %vm669 = vmor %vm667, %vm668
    %v670 = vsel %vm669, %v662, %v666
    %v671 = vand.u32 2147483647, %v661
    %vm672 = vcmp.eq.f32.partialorder %v671, 8.507059e+37
    %v673 = vand.u32 %v661, 2147483648
    %v674 = vor.u32 1.1754944e-38, %v673
    %v675 = vsel %vm672, %v674, %v670
    %v676 = vmul.f32 1.0, %v675
    %v677 = vtanh.pop %v656
    %v678 = vmul.f32 %v676, %v560
    %680 = vrot.lane.b32.xlu0 %v677, 64
    %v681 = vpop.permute.xlu0 %680
    %v683 = vmul.f32 %v676, %v681
    %685 = vrot.lane.b32.xlu0 %v683, 32
    %v686 = vpop.permute.xlu0 %685
    %v688 = vadd.f32 %v678, %v686
    %v689 = vtanh.pop %v688
    %691 = vrot.lane.b32.xlu0 %v689, 64
    %v692 = vpop.permute.xlu0 %691
    %v694 = vmul.f32 %v676, %v692
    %696 = vrot.lane.b32.xlu0 %v694, 32
    %v697 = vpop.permute.xlu0 %696
    %700 = vrot.lane.b32.xlu0 %v635, 64
    %v701 = vpop.permute.xlu0 %700
    %v703 = vsel %vm115, %v697, %v701
    %v705 = vsel %vm184, %v703, 0
    %707 = vmatpush.msra.mxu0 0.0
    %708 = vmatpush.msra.mxu0 0.0
    %709 = vmatpush.msra.mxu0 0.0
    %710 = vmatpush.msra.mxu0 0.0
    %711 = vmatpush.msra.mxu0 0.0
    %712 = vmatpush.msra.mxu0 0.0
    %713 = vmatpush.msra.mxu0 0.0
    %714 = vmatpush.msra.mxu0 0.0
    %715 = vmatpush.msra.mxu0 %v72
    %716 = vmatpush.msra.mxu0 %v71
    %717 = vmatpush.msra.mxu0 %v70
    %718 = vmatpush.msra.mxu0 %v69
    %719 = vmatpush.msra.mxu0 %v68
    %720 = vmatpush.msra.mxu0 %v67
    %721 = vmatpush.msra.mxu0 %v66
    %722 = vmatpush.msra.mxu0 %v65
    %723 = vmatmul.f32.gmra.mxu0 %v705
    %v724 = vpop.f32.mrf.mxu0
    %v725 = vadd.f32 %v182, %v724
    %726 = vdwg.mxu0
    %v727 = vxor.u32 %v725, 2147483648
    %v728 = vmul.f32 %v727, 1.442695
    %v729 = vpow.pop %v728
    %v730 = vadd.f32 %v729, 1.0
    %v731 = vrcp.pop %v730
    %v732 = vmul.f32 %v730, %v731
    %v733 = vsub.f32 1.0, %v732
    %v734 = vmul.f32 %v731, %v733
    %v735 = vadd.f32 %v731, %v734
    %vm736 = vweird.f32 %v730
    %vm737 = vweird.f32 %v731
    %vm738 = vmor %vm736, %vm737
    %v739 = vsel %vm738, %v731, %v735
    %v740 = vand.u32 2147483647, %v730
    %vm741 = vcmp.eq.f32.partialorder %v740, 8.507059e+37
    %v742 = vand.u32 %v730, 2147483648
    %v743 = vor.u32 1.1754944e-38, %v742
    %v744 = vsel %vm741, %v743, %v739
    %v745 = vmul.f32 1.0, %v744
    %v746 = vtanh.pop %v725
    %v747 = vmul.f32 %v745, %v629
    %749 = vrot.lane.b32.xlu0 %v746, 64
    %v750 = vpop.permute.xlu0 %749
    %v752 = vmul.f32 %v745, %v750
    %754 = vrot.lane.b32.xlu0 %v752, 32
    %v755 = vpop.permute.xlu0 %754
    %v757 = vadd.f32 %v747, %v755
    %v758 = vtanh.pop %v757
    %760 = vrot.lane.b32.xlu0 %v758, 64
    %v761 = vpop.permute.xlu0 %760
    %v763 = vmul.f32 %v745, %v761
    %v765 = vrot.slane %v113, 2
    %v767 = vsel %vm115, %v697, 0
    %769 = vmatpush.msra.mxu0 0.0
    %770 = vmatpush.msra.mxu0 0.0
    %771 = vmatpush.msra.mxu0 0.0
    %772 = vmatpush.msra.mxu0 0.0
    %773 = vmatpush.msra.mxu0 0.0
    %774 = vmatpush.msra.mxu0 0.0
    %775 = vmatpush.msra.mxu0 0.0
    %776 = vmatpush.msra.mxu0 0.0
    %777 = vmatpush.msra.mxu0 0.0
    %778 = vmatpush.msra.mxu0 0.0
    %779 = vmatpush.msra.mxu0 0.0
    %780 = vmatpush.msra.mxu0 0.0
    %781 = vmatpush.msra.mxu0 %v64
    %782 = vmatpush.msra.mxu0 %v63
    %783 = vmatpush.msra.mxu0 %v62
    %784 = vmatpush.msra.mxu0 %v61
    %785 = vmatmul.f32.gmra.mxu0 %v767
    %v786 = vpop.f32.mrf.mxu0
    %v787 = vadd.f32 %v765, %v786
    %788 = vdwg.mxu0
    %v789 = vxor.u32 %v787, 2147483648
    %v790 = vmul.f32 %v789, 1.442695
    %v791 = vpow.pop %v790
    %v792 = vadd.f32 %v791, 1.0
    %v793 = vrcp.pop %v792
    %v794 = vmul.f32 %v792, %v793
    %v795 = vsub.f32 1.0, %v794
    %v796 = vmul.f32 %v793, %v795
    %v797 = vadd.f32 %v793, %v796
    %vm798 = vweird.f32 %v792
    %vm799 = vweird.f32 %v793
    %vm800 = vmor %vm798, %vm799
    %v801 = vsel %vm800, %v793, %v797
    %v802 = vand.u32 2147483647, %v792
    %vm803 = vcmp.eq.f32.partialorder %v802, 8.507059e+37
    %v804 = vand.u32 %v792, 2147483648
    %v805 = vor.u32 1.1754944e-38, %v804
    %v806 = vsel %vm803, %v805, %v801
    %v807 = vmul.f32 1.0, %v806
    %v808 = vtanh.pop %v787
    %v809 = vmul.f32 %v807, %v688
    %811 = vrot.lane.b32.xlu0 %v808, 64
    %v812 = vpop.permute.xlu0 %811
    %v814 = vmul.f32 %v807, %v812
    %816 = vrot.lane.b32.xlu0 %v814, 32
    %v817 = vpop.permute.xlu0 %816
    %v819 = vadd.f32 %v809, %v817
    %v820 = vtanh.pop %v819
    %822 = vrot.lane.b32.xlu0 %v820, 64
    %v823 = vpop.permute.xlu0 %822
    %v825 = vmul.f32 %v807, %v823
    %827 = vrot.lane.b32.xlu0 %v825, 32
    %v828 = vpop.permute.xlu0 %827
    %831 = vrot.lane.b32.xlu0 %v763, 64
    %v832 = vpop.permute.xlu0 %831
    %v834 = vsel %vm115, %v828, %v832
    %v836 = vsel %vm184, %v834, 0
    %838 = vmatpush.msra.mxu0 0.0
    %839 = vmatpush.msra.mxu0 0.0
    %840 = vmatpush.msra.mxu0 0.0
    %841 = vmatpush.msra.mxu0 0.0
    %842 = vmatpush.msra.mxu0 0.0
    %843 = vmatpush.msra.mxu0 0.0
    %844 = vmatpush.msra.mxu0 0.0
    %845 = vmatpush.msra.mxu0 0.0
    %846 = vmatpush.msra.mxu0 %v72
    %847 = vmatpush.msra.mxu0 %v71
    %848 = vmatpush.msra.mxu0 %v70
    %849 = vmatpush.msra.mxu0 %v69
    %850 = vmatpush.msra.mxu0 %v68
    %851 = vmatpush.msra.mxu0 %v67
    %852 = vmatpush.msra.mxu0 %v66
    %853 = vmatpush.msra.mxu0 %v65
    %854 = vmatmul.f32.gmra.mxu0 %v836
    %v855 = vpop.f32.mrf.mxu0
    %v856 = vadd.f32 %v182, %v855
    %857 = vdwg.mxu0
    %v858 = vxor.u32 %v856, 2147483648
    %v859 = vmul.f32 %v858, 1.442695
    %v860 = vpow.pop %v859
    %v861 = vadd.f32 %v860, 1.0
    %v862 = vrcp.pop %v861
    %v863 = vmul.f32 %v861, %v862
    %v864 = vsub.f32 1.0, %v863
    %v865 = vmul.f32 %v862, %v864
    %v866 = vadd.f32 %v862, %v865
    %vm867 = vweird.f32 %v861
    %vm868 = vweird.f32 %v862
    %vm869 = vmor %vm867, %vm868
    %v870 = vsel %vm869, %v862, %v866
    %v871 = vand.u32 2147483647, %v861
    %vm872 = vcmp.eq.f32.partialorder %v871, 8.507059e+37
    %v873 = vand.u32 %v861, 2147483648
    %v874 = vor.u32 1.1754944e-38, %v873
    %v875 = vsel %vm872, %v874, %v870
    %v876 = vmul.f32 1.0, %v875
    %v877 = vtanh.pop %v856
    %v878 = vmul.f32 %v876, %v757
    %880 = vrot.lane.b32.xlu0 %v877, 64
    %v881 = vpop.permute.xlu0 %880
    %v883 = vmul.f32 %v876, %v881
    %885 = vrot.lane.b32.xlu0 %v883, 32
    %v886 = vpop.permute.xlu0 %885
    %v888 = vadd.f32 %v878, %v886
    %v889 = vtanh.pop %v888
    %891 = vrot.lane.b32.xlu0 %v889, 64
    %v892 = vpop.permute.xlu0 %891
    %v894 = vmul.f32 %v876, %v892
    %v895 = vrot.slane %v113, 4
    %v897 = vsel %vm115, %v828, 0
    %899 = vmatpush.msra.mxu0 0.0
    %900 = vmatpush.msra.mxu0 0.0
    %901 = vmatpush.msra.mxu0 0.0
    %902 = vmatpush.msra.mxu0 0.0
    %903 = vmatpush.msra.mxu0 0.0
    %904 = vmatpush.msra.mxu0 0.0
    %905 = vmatpush.msra.mxu0 0.0
    %906 = vmatpush.msra.mxu0 0.0
    %907 = vmatpush.msra.mxu0 0.0
    %908 = vmatpush.msra.mxu0 0.0
    %909 = vmatpush.msra.mxu0 0.0
    %910 = vmatpush.msra.mxu0 0.0
    %911 = vmatpush.msra.mxu0 %v64
    %912 = vmatpush.msra.mxu0 %v63
    %913 = vmatpush.msra.mxu0 %v62
    %914 = vmatpush.msra.mxu0 %v61
    %915 = vmatmul.f32.gmra.mxu0 %v897
    %v916 = vpop.f32.mrf.mxu0
    %v917 = vadd.f32 %v895, %v916
    %918 = vdwg.mxu0
    %v919 = vxor.u32 %v917, 2147483648
    %v920 = vmul.f32 %v919, 1.442695
    %v921 = vpow.pop %v920
    %v922 = vadd.f32 %v921, 1.0
    %v923 = vrcp.pop %v922
    %v924 = vmul.f32 %v922, %v923
    %v925 = vsub.f32 1.0, %v924
    %v926 = vmul.f32 %v923, %v925
    %v927 = vadd.f32 %v923, %v926
    %vm928 = vweird.f32 %v922
    %vm929 = vweird.f32 %v923
    %vm930 = vmor %vm928, %vm929
    %v931 = vsel %vm930, %v923, %v927
    %v932 = vand.u32 2147483647, %v922
    %vm933 = vcmp.eq.f32.partialorder %v932, 8.507059e+37
    %v934 = vand.u32 %v922, 2147483648
    %v935 = vor.u32 1.1754944e-38, %v934
    %v936 = vsel %vm933, %v935, %v931
    %v937 = vmul.f32 1.0, %v936
    %v938 = vtanh.pop %v917
    %v939 = vmul.f32 %v937, %v819
    %941 = vrot.lane.b32.xlu0 %v938, 64
    %v942 = vpop.permute.xlu0 %941
    %v944 = vmul.f32 %v937, %v942
    %946 = vrot.lane.b32.xlu0 %v944, 32
    %v947 = vpop.permute.xlu0 %946
    %v949 = vadd.f32 %v939, %v947
    %v950 = vtanh.pop %v949
    %952 = vrot.lane.b32.xlu0 %v950, 64
    %v953 = vpop.permute.xlu0 %952
    %v955 = vmul.f32 %v937, %v953
    %957 = vrot.lane.b32.xlu0 %v955, 32
    %v958 = vpop.permute.xlu0 %957
    %961 = vrot.lane.b32.xlu0 %v894, 64
    %v962 = vpop.permute.xlu0 %961
    %v964 = vsel %vm115, %v958, %v962
    %v966 = vsel %vm184, %v964, 0
    %968 = vmatpush.msra.mxu0 0.0
    %969 = vmatpush.msra.mxu0 0.0
    %970 = vmatpush.msra.mxu0 0.0
    %971 = vmatpush.msra.mxu0 0.0
    %972 = vmatpush.msra.mxu0 0.0
    %973 = vmatpush.msra.mxu0 0.0
    %974 = vmatpush.msra.mxu0 0.0
    %975 = vmatpush.msra.mxu0 0.0
    %976 = vmatpush.msra.mxu0 %v72
    %977 = vmatpush.msra.mxu0 %v71
    %978 = vmatpush.msra.mxu0 %v70
    %979 = vmatpush.msra.mxu0 %v69
    %980 = vmatpush.msra.mxu0 %v68
    %981 = vmatpush.msra.mxu0 %v67
    %982 = vmatpush.msra.mxu0 %v66
    %983 = vmatpush.msra.mxu0 %v65
    %984 = vmatmul.f32.gmra.mxu0 %v966
    %v985 = vpop.f32.mrf.mxu0
    %v986 = vadd.f32 %v182, %v985
    %987 = vdwg.mxu0
    %v988 = vxor.u32 %v986, 2147483648
    %v989 = vmul.f32 %v988, 1.442695
    %v990 = vpow.pop %v989
    %v991 = vadd.f32 %v990, 1.0
    %v992 = vrcp.pop %v991
    %v993 = vmul.f32 %v991, %v992
    %v994 = vsub.f32 1.0, %v993
    %v995 = vmul.f32 %v992, %v994
    %v996 = vadd.f32 %v992, %v995
    %vm997 = vweird.f32 %v991
    %vm998 = vweird.f32 %v992
    %vm999 = vmor %vm997, %vm998
    %v1000 = vsel %vm999, %v992, %v996
    %v1001 = vand.u32 2147483647, %v991
    %vm1002 = vcmp.eq.f32.partialorder %v1001, 8.507059e+37
    %v1003 = vand.u32 %v991, 2147483648
    %v1004 = vor.u32 1.1754944e-38, %v1003
    %v1005 = vsel %vm1002, %v1004, %v1000
    %v1006 = vmul.f32 1.0, %v1005
    %v1007 = vtanh.pop %v986
    %v1008 = vmul.f32 %v1006, %v888
    %1010 = vrot.lane.b32.xlu0 %v1007, 64
    %v1011 = vpop.permute.xlu0 %1010
    %v1013 = vmul.f32 %v1006, %v1011
    %1015 = vrot.lane.b32.xlu0 %v1013, 32
    %v1016 = vpop.permute.xlu0 %1015
    %v1018 = vadd.f32 %v1008, %v1016
    %v1019 = vtanh.pop %v1018
    %1021 = vrot.lane.b32.xlu0 %v1019, 64
    %v1022 = vpop.permute.xlu0 %1021
    %v1024 = vmul.f32 %v1006, %v1022
    %v1025 = vrot.slane %v113, 6
    %v1027 = vsel %vm115, %v958, 0
    %1029 = vmatpush.msra.mxu0 0.0
    %1030 = vmatpush.msra.mxu0 0.0
    %1031 = vmatpush.msra.mxu0 0.0
    %1032 = vmatpush.msra.mxu0 0.0
    %1033 = vmatpush.msra.mxu0 0.0
    %1034 = vmatpush.msra.mxu0 0.0
    %1035 = vmatpush.msra.mxu0 0.0
    %1036 = vmatpush.msra.mxu0 0.0
    %1037 = vmatpush.msra.mxu0 0.0
    %1038 = vmatpush.msra.mxu0 0.0
    %1039 = vmatpush.msra.mxu0 0.0
    %1040 = vmatpush.msra.mxu0 0.0
    %1041 = vmatpush.msra.mxu0 %v64
    %1042 = vmatpush.msra.mxu0 %v63
    %1043 = vmatpush.msra.mxu0 %v62
    %1044 = vmatpush.msra.mxu0 %v61
    %1045 = vmatmul.f32.gmra.mxu0 %v1027
    %v1046 = vpop.f32.mrf.mxu0
    %v1047 = vadd.f32 %v1025, %v1046
    %1048 = vdwg.mxu0
    %v1049 = vxor.u32 %v1047, 2147483648
    %v1050 = vmul.f32 %v1049, 1.442695
    %v1051 = vpow.pop %v1050
    %v1052 = vadd.f32 %v1051, 1.0
    %v1053 = vrcp.pop %v1052
    %v1054 = vmul.f32 %v1052, %v1053
    %v1055 = vsub.f32 1.0, %v1054
    %v1056 = vmul.f32 %v1053, %v1055
    %v1057 = vadd.f32 %v1053, %v1056
    %vm1058 = vweird.f32 %v1052
    %vm1059 = vweird.f32 %v1053
    %vm1060 = vmor %vm1058, %vm1059
    %v1061 = vsel %vm1060, %v1053, %v1057
    %v1062 = vand.u32 2147483647, %v1052
    %vm1063 = vcmp.eq.f32.partialorder %v1062, 8.507059e+37
    %v1064 = vand.u32 %v1052, 2147483648
    %v1065 = vor.u32 1.1754944e-38, %v1064
    %v1066 = vsel %vm1063, %v1065, %v1061
    %v1067 = vmul.f32 1.0, %v1066
    %v1068 = vtanh.pop %v1047
    %v1069 = vmul.f32 %v1067, %v949
    %1071 = vrot.lane.b32.xlu0 %v1068, 64
    %v1072 = vpop.permute.xlu0 %1071
    %v1074 = vmul.f32 %v1067, %v1072
    %1076 = vrot.lane.b32.xlu0 %v1074, 32
    %v1077 = vpop.permute.xlu0 %1076
    %v1079 = vadd.f32 %v1069, %v1077
    %v1080 = vtanh.pop %v1079
    %1082 = vrot.lane.b32.xlu0 %v1080, 64
    %v1083 = vpop.permute.xlu0 %1082
    %v1085 = vmul.f32 %v1067, %v1083
    %1087 = vrot.lane.b32.xlu0 %v1085, 32
    %v1088 = vpop.permute.xlu0 %1087
    %1091 = vrot.lane.b32.xlu0 %v1024, 64
    %v1092 = vpop.permute.xlu0 %1091
    %v1094 = vsel %vm115, %v1088, %v1092
    %v1096 = vsel %vm184, %v1094, 0
    %1098 = vmatpush.msra.mxu0 0.0
    %1099 = vmatpush.msra.mxu0 0.0
    %1100 = vmatpush.msra.mxu0 0.0
    %1101 = vmatpush.msra.mxu0 0.0
    %1102 = vmatpush.msra.mxu0 0.0
    %1103 = vmatpush.msra.mxu0 0.0
    %1104 = vmatpush.msra.mxu0 0.0
    %1105 = vmatpush.msra.mxu0 0.0
    %1106 = vmatpush.msra.mxu0 %v72
    %1107 = vmatpush.msra.mxu0 %v71
    %1108 = vmatpush.msra.mxu0 %v70
    %1109 = vmatpush.msra.mxu0 %v69
    %1110 = vmatpush.msra.mxu0 %v68
    %1111 = vmatpush.msra.mxu0 %v67
    %1112 = vmatpush.msra.mxu0 %v66
    %1113 = vmatpush.msra.mxu0 %v65
    %1114 = vmatmul.f32.gmra.mxu0 %v1096
    %v1115 = vpop.f32.mrf.mxu0
    %v1116 = vadd.f32 %v182, %v1115
    %1117 = vdwg.mxu0
    %v1118 = vxor.u32 %v1116, 2147483648
    %v1119 = vmul.f32 %v1118, 1.442695
    %v1120 = vpow.pop %v1119
    %v1121 = vadd.f32 %v1120, 1.0
    %v1122 = vrcp.pop %v1121
    %v1123 = vmul.f32 %v1121, %v1122
    %v1124 = vsub.f32 1.0, %v1123
    %v1125 = vmul.f32 %v1122, %v1124
    %v1126 = vadd.f32 %v1122, %v1125
    %vm1127 = vweird.f32 %v1121
    %vm1128 = vweird.f32 %v1122
    %vm1129 = vmor %vm1127, %vm1128
    %v1130 = vsel %vm1129, %v1122, %v1126
    %v1131 = vand.u32 2147483647, %v1121
    %vm1132 = vcmp.eq.f32.partialorder %v1131, 8.507059e+37
    %v1133 = vand.u32 %v1121, 2147483648
    %v1134 = vor.u32 1.1754944e-38, %v1133
    %v1135 = vsel %vm1132, %v1134, %v1130
    %v1136 = vmul.f32 1.0, %v1135
    %v1137 = vtanh.pop %v1116
    %v1138 = vmul.f32 %v1136, %v1018
    %1140 = vrot.lane.b32.xlu0 %v1137, 64
    %v1141 = vpop.permute.xlu0 %1140
    %v1143 = vmul.f32 %v1136, %v1141
    %1145 = vrot.lane.b32.xlu0 %v1143, 32
    %v1146 = vpop.permute.xlu0 %1145
    %v1148 = vadd.f32 %v1138, %v1146
    %v1149 = vtanh.pop %v1148
    %1151 = vrot.lane.b32.xlu0 %v1149, 64
    %v1152 = vpop.permute.xlu0 %1151
    %v1154 = vmul.f32 %v1136, %v1152
    %v1155 = vrot.slane %v375, 6
    %v1157 = vrot.slane %v505, 4
    %v1159 = vrot.slane %v635, 2
    %v1161 = vrot.slane %v894, 6
    %v1163 = vrot.slane %v1024, 4
    %v1166 = vrot.slane %v1154, 2
    %vm1168 = vcmask 1041408
    %v1169 = vsel %vm1168, %v244, %v1155
    %v1170 = vsel %vm88, %v1169, %v1157
    %vm1171 = vcmask 1045504
    %v1172 = vsel %vm1171, %v1170, %v1159
    %v1173 = vsel %vm1168, %v763, %v1161
    %v1174 = vsel %vm88, %v1173, %v1163
    %v1175 = vsel %vm1171, %v1174, %v1166
    %v1176 = vld [vmem:[#allocation2] sm:$0xff]
    %v1177 = vld [vmem:[#allocation2 + $0x8] sm:$0xff]
    %v1178 = vld [vmem:[#allocation2 + $0x10] sm:$0xff]
    %v1179 = vld [vmem:[#allocation2 + $0x18] sm:$0xff]
    %v1180 = vld [vmem:[%s7] sm:$0x1]
    %v1182 = vperm.slane %v1180, 0
    %1186 = vrot.lane.b32.xlu0 %v1172, 32
    %v1187 = vpop.permute.xlu0 %1186
    %1188 = vrot.lane.b32.xlu0 %v1175, 32
    %v1189 = vpop.permute.xlu0 %1188
    %v1190 = vsel %vm115, %v1187, 0
    %v1192 = vsel %vm115, %v1189, 0
    %1194 = vmatpush.msra.mxu0 0.0
    %1195 = vmatpush.msra.mxu0 0.0
    %1196 = vmatpush.msra.mxu0 0.0
    %1197 = vmatpush.msra.mxu0 0.0
    %1198 = vmatpush.msra.mxu0 0.0
    %1199 = vmatpush.msra.mxu0 0.0
    %1200 = vmatpush.msra.mxu0 0.0
    %1201 = vmatpush.msra.mxu0 0.0
    %1202 = vmatpush.msra.mxu0 0.0
    %1203 = vmatpush.msra.mxu0 0.0
    %1204 = vmatpush.msra.mxu0 0.0
    %1205 = vmatpush.msra.mxu0 0.0
    %1206 = vmatpush.msra.mxu0 %v1179
    %1207 = vmatpush.msra.mxu0 %v1178
    %1208 = vmatpush.msra.mxu0 %v1177
    %1209 = vmatpush.msra.mxu0 %v1176
    %1210 = vmatmul.f32.gmra.mxu0 %v1190
    %v1211 = vpop.f32.mrf.mxu0
    %v1212 = vadd.f32 %v1182, %v1211
    %1213 = vmatmul.f32.gmra.mxu0 %v1192
    %v1214 = vpop.f32.mrf.mxu0
    %v1215 = vadd.f32 %v1182, %v1214
    %1216 = vdwg.mxu0
    %v1217 = vtanh.pop %v1212
    %v1218 = vtanh.pop %v1215
    %v1219 = vld [vmem:[%s8] sm:$0xff]
    %v1220 = vld [vmem:[%s8 + $0x8] sm:$0xff]
    %v1221 = vld [vmem:[%s8 + $0x10] sm:$0xff]
    %v1222 = vld [vmem:[%s8 + $0x18] sm:$0xff]
    %v1224 = vsel %vm115, %v1217, 0
    %v1227 = vsel %vm115, %v1218, 0
    %1229 = vmatpush.msra.mxu0 0.0
    %1230 = vmatpush.msra.mxu0 0.0
    %1231 = vmatpush.msra.mxu0 0.0
    %1232 = vmatpush.msra.mxu0 0.0
    %1233 = vmatpush.msra.mxu0 0.0
    %1234 = vmatpush.msra.mxu0 0.0
    %1235 = vmatpush.msra.mxu0 0.0
    %1236 = vmatpush.msra.mxu0 0.0
    %1237 = vmatpush.msra.mxu0 0.0
    %1238 = vmatpush.msra.mxu0 0.0
    %1239 = vmatpush.msra.mxu0 0.0
    %1240 = vmatpush.msra.mxu0 0.0
    %1241 = vmatpush.msra.mxu0 %v1222
    %1242 = vmatpush.msra.mxu0 %v1221
    %1243 = vmatpush.msra.mxu0 %v1220
    %1244 = vmatpush.msra.mxu0 %v1219
    %1245 = vmatmul.f32.gmra.mxu0 %v1224
    %v1246 = vpop.f32.mrf.mxu0
    %v1247 = vadd.f32 0.0, %v1246
    %1248 = vmatmul.f32.gmra.mxu0 %v1227
    %v1249 = vpop.f32.mrf.mxu0
    %v1250 = vadd.f32 0.0, %v1249
    %1251 = vdwg.mxu0
    %v1254 = vrot.slane %v1247, 2
    %v1255 = vrot.slane %v1247, 4
    %v1256 = vrot.slane %v1247, 6
    %v1257 = vrot.slane %v1250, 2
    %v1258 = vrot.slane %v1250, 4
    %v1259 = vrot.slane %v1250, 6
    %vm1266 = vcmask 1024
    %v1267 = vsel %vm1266, %v1247, -inf
    %v1268 = vsel %vm1266, %v1254, -inf
    %v1269 = vsel %vm1266, %v1255, -inf
    %v1270 = vsel %vm1266, %v1256, -inf
    %v1271 = vsel %vm1266, %v1250, -inf
    %v1272 = vmax.f32 %v1267, %v1271
    %v1273 = vsel %vm1266, %v1257, -inf
    %v1274 = vmax.f32 %v1268, %v1273
    %v1275 = vsel %vm1266, %v1258, -inf
    %v1276 = vmax.f32 %v1269, %v1275
    %v1277 = vsel %vm1266, %v1259, -inf
    %v1278 = vmax.f32 %v1270, %v1277
    %v1279 = vmax.f32 %v1272, %v1274
    %v1280 = vmax.f32 %v1276, %v1278
    %v1281 = vmax.f32 %v1279, %v1280
    %v1282 = vsub.f32 %v1247, %v1281
    %v1283 = vsub.f32 %v1254, %v1281
    %v1284 = vsub.f32 %v1255, %v1281
    %v1285 = vsub.f32 %v1256, %v1281
    %v1286 = vsub.f32 %v1250, %v1281
    %v1287 = vsub.f32 %v1257, %v1281
    %v1288 = vsub.f32 %v1258, %v1281
    %v1289 = vsub.f32 %v1259, %v1281
    %v1290 = vmul.f32 %v1282, 1.442695
    %v1291 = vpow.pop %v1290
    %v1292 = vmul.f32 %v1283, 1.442695
    %v1293 = vpow.pop %v1292
    %v1294 = vmul.f32 %v1284, 1.442695
    %v1295 = vpow.pop %v1294
    %v1296 = vmul.f32 %v1285, 1.442695
    %v1297 = vpow.pop %v1296
    %v1298 = vmul.f32 %v1286, 1.442695
    %v1299 = vpow.pop %v1298
    %v1300 = vmul.f32 %v1287, 1.442695
    %v1301 = vpow.pop %v1300
    %v1302 = vmul.f32 %v1288, 1.442695
    %v1303 = vpow.pop %v1302
    %v1304 = vmul.f32 %v1289, 1.442695
    %v1305 = vpow.pop %v1304
    %v1306 = vsel %vm1266, %v1291, 0.0
    %v1307 = vsel %vm1266, %v1293, 0.0
    %v1308 = vadd.f32 %v1306, %v1307
    %v1309 = vsel %vm1266, %v1295, 0.0
    %v1310 = vadd.f32 %v1308, %v1309
    %v1311 = vsel %vm1266, %v1297, 0.0
    %v1312 = vadd.f32 %v1310, %v1311
    %v1313 = vsel %vm1266, %v1299, 0.0
    %v1314 = vadd.f32 %v1312, %v1313
    %v1315 = vsel %vm1266, %v1301, 0.0
    %v1316 = vadd.f32 %v1314, %v1315
    %v1317 = vsel %vm1266, %v1303, 0.0
    %v1318 = vadd.f32 %v1316, %v1317
    %v1319 = vsel %vm1266, %v1305, 0.0
    %v1320 = vadd.f32 %v1318, %v1319
    %v1321 = vrcp.pop %v1320
    %v1322 = vmul.f32 %v1320, %v1321
    %v1323 = vsub.f32 1.0, %v1322
    %v1324 = vmul.f32 %v1321, %v1323
    %v1325 = vadd.f32 %v1321, %v1324
    %vm1326 = vweird.f32 %v1320
    %vm1327 = vweird.f32 %v1321
    %vm1328 = vmor %vm1326, %vm1327
    %v1329 = vsel %vm1328, %v1321, %v1325
    %v1330 = vand.u32 2147483647, %v1320
    %vm1331 = vcmp.eq.f32.partialorder %v1330, 8.507059e+37
    %v1332 = vand.u32 %v1320, 2147483648
    %v1333 = vor.u32 1.1754944e-38, %v1332
    %v1334 = vsel %vm1331, %v1333, %v1329
    %v1335 = vmul.f32 %v1291, %v1334
    %v1336 = vmul.f32 %v1293, %v1334
    %v1337 = vmul.f32 %v1295, %v1334
    %v1338 = vmul.f32 %v1297, %v1334
    %v1339 = vmul.f32 %v1299, %v1334
    %v1340 = vmul.f32 %v1301, %v1334
    %v1341 = vmul.f32 %v1303, %v1334
    %v1342 = vmul.f32 %v1305, %v1334
    %1344 = vset.pattern.permute.xlu0 0
    %1345 = vperm.xlu0 %1344, %v1335
    %v1346 = vpop.permute.xlu0 %1345
    %v1349 = vunpack.c.l.s4 269488144
    %v1350 = vunpack.c.0.s8 %v1349
    %v1351 = vperm.slane %v1346, %v1350
    %v1352 = vmul.f32 %v244, %v1351
    %v1353 = vadd.f32 %v1352, 0.0
    %1355 = vset.pattern.permute.xlu0 0
    %1356 = vperm.xlu0 %1355, %v1336
    %v1357 = vpop.permute.xlu0 %1356
    %v1360 = vunpack.c.l.s4 269488144
    %v1361 = vunpack.c.0.s8 %v1360
    %v1362 = vperm.slane %v1357, %v1361
    %v1363 = vmul.f32 %v375, %v1362
    %v1364 = vadd.f32 %v1353, %v1363
    %1366 = vset.pattern.permute.xlu0 0
    %1367 = vperm.xlu0 %1366, %v1337
    %v1368 = vpop.permute.xlu0 %1367
    %v1371 = vunpack.c.l.s4 269488144
    %v1372 = vunpack.c.0.s8 %v1371
    %v1373 = vperm.slane %v1368, %v1372
    %v1374 = vmul.f32 %v505, %v1373
    %v1375 = vadd.f32 %v1364, %v1374
    %1377 = vset.pattern.permute.xlu0 0
    %1378 = vperm.xlu0 %1377, %v1338
    %v1379 = vpop.permute.xlu0 %1378
    %v1382 = vunpack.c.l.s4 269488144
    %v1383 = vunpack.c.0.s8 %v1382
    %v1384 = vperm.slane %v1379, %v1383
    %v1385 = vmul.f32 %v635, %v1384
    %v1386 = vadd.f32 %v1375, %v1385
    %1388 = vset.pattern.permute.xlu0 0
    %1389 = vperm.xlu0 %1388, %v1339
    %v1390 = vpop.permute.xlu0 %1389
    %v1393 = vunpack.c.l.s4 269488144
    %v1394 = vunpack.c.0.s8 %v1393
    %v1395 = vperm.slane %v1390, %v1394
    %v1396 = vmul.f32 %v763, %v1395
    %v1397 = vadd.f32 %v1386, %v1396
    %1399 = vset.pattern.permute.xlu0 0
    %1400 = vperm.xlu0 %1399, %v1340
    %v1401 = vpop.permute.xlu0 %1400
    %v1404 = vunpack.c.l.s4 269488144
    %v1405 = vunpack.c.0.s8 %v1404
    %v1406 = vperm.slane %v1401, %v1405
    %v1407 = vmul.f32 %v894, %v1406
    %v1408 = vadd.f32 %v1397, %v1407
    %1410 = vset.pattern.permute.xlu0 0
    %1411 = vperm.xlu0 %1410, %v1341
    %v1412 = vpop.permute.xlu0 %1411
    %v1415 = vunpack.c.l.s4 269488144
    %v1416 = vunpack.c.0.s8 %v1415
    %v1417 = vperm.slane %v1412, %v1416
    %v1418 = vmul.f32 %v1024, %v1417
    %v1419 = vadd.f32 %v1408, %v1418
    %1421 = vset.pattern.permute.xlu0 0
    %1422 = vperm.xlu0 %1421, %v1342
    %v1423 = vpop.permute.xlu0 %1422
    %v1426 = vunpack.c.l.s4 269488144
    %v1427 = vunpack.c.0.s8 %v1426
    %v1428 = vperm.slane %v1423, %v1427
    %v1429 = vmul.f32 %v1154, %v1428
    %v1430 = vadd.f32 %v1419, %v1429
    %v1431 = vld [vmem:[%s9] sm:$0xff]
    %v1432 = vld [vmem:[%s9 + $0x8] sm:$0xff]
    %v1433 = vld [vmem:[%s9 + $0x10] sm:$0xff]
    %v1434 = vld [vmem:[%s9 + $0x18] sm:$0xff]
    %v1435 = vld [vmem:[%s10] sm:$0x1]
    %v1437 = vperm.slane %v1435, 0
    %1440 = vrot.lane.b32.xlu0 %v1430, 32
    %v1441 = vpop.permute.xlu0 %1440
    %v1442 = vsel %vm115, %v1441, 0
    %1444 = vmatpush.msra.mxu0 0.0
    %1445 = vmatpush.msra.mxu0 0.0
    %1446 = vmatpush.msra.mxu0 0.0
    %1447 = vmatpush.msra.mxu0 0.0
    %1448 = vmatpush.msra.mxu0 0.0
    %1449 = vmatpush.msra.mxu0 0.0
    %1450 = vmatpush.msra.mxu0 0.0
    %1451 = vmatpush.msra.mxu0 0.0
    %1452 = vmatpush.msra.mxu0 0.0
    %1453 = vmatpush.msra.mxu0 0.0
    %1454 = vmatpush.msra.mxu0 0.0
    %1455 = vmatpush.msra.mxu0 0.0
    %1456 = vmatpush.msra.mxu0 %v1434
    %1457 = vmatpush.msra.mxu0 %v1433
    %1458 = vmatpush.msra.mxu0 %v1432
    %1459 = vmatpush.msra.mxu0 %v1431
    %1460 = vmatmul.f32.gmra.mxu0 %v1442
    %v1461 = vpop.f32.mrf.mxu0
    %v1462 = vadd.f32 %v1437, %v1461
    %1463 = vdwg.mxu0
    %v1464 = vmax.f32 %v1462, 0.0
    %v1465 = vld [vmem:[%s11] sm:$0xff]
    %v1466 = vld [vmem:[%s11 + $0x8] sm:$0xff]
    %v1467 = vld [vmem:[%s12] sm:$0x1]
    %v1469 = vperm.slane %v1467, 0
    %vm1471 = vcmask 130048
    %v1473 = vsel %vm1471, %v1464, 0
    %1475 = vmatpush.msra.mxu0 0.0
    %1476 = vmatpush.msra.mxu0 0.0
    %1477 = vmatpush.msra.mxu0 0.0
    %1478 = vmatpush.msra.mxu0 0.0
    %1479 = vmatpush.msra.mxu0 0.0
    %1480 = vmatpush.msra.mxu0 0.0
    %1481 = vmatpush.msra.mxu0 0.0
    %1482 = vmatpush.msra.mxu0 0.0
    %1483 = vmatpush.msra.mxu0 0.0
    %1484 = vmatpush.msra.mxu0 0.0
    %1485 = vmatpush.msra.mxu0 0.0
    %1486 = vmatpush.msra.mxu0 0.0
    %1487 = vmatpush.msra.mxu0 0.0
    %1488 = vmatpush.msra.mxu0 0.0
    %1489 = vmatpush.msra.mxu0 %v1466
    %1490 = vmatpush.msra.mxu0 %v1465
    %1491 = vmatmul.f32.gmra.mxu0 %v1473
    %v1492 = vpop.f32.mrf.mxu0
    %v1493 = vadd.f32 %v1469, %v1492
    %1494 = vdwg.mxu0
    %vm1495 = vcmask 17408
    %1496 = vst.msk [vmem:[#allocation5] sm:$0x3] %vm1495, %v1493
    // Predicated region
    $region58: #{tpu_custom_call.1} parent=1 // pred_check
      _
    $region59: #{tpu_custom_call.1} parent=1 // pred_check_branch
      %1498 = sbr.rel (0) target = $region61
    $region60: #{tpu_custom_call.1} parent=1 // pred_region
      %1500 = vsyncadd [#allocation4], 0
      %s1502 = sshll.u32 [#allocation5], 4
      %s1503 = int_to_ptr.vmem [resolvable:$true] %s1502
      %s1504 = sshll.u32 %s13, 4
      %s1505 = int_to_ptr.hbm [resolvable:$true] %s1504
      %1507 = dma.vmem_to_hbm [thread:$0]  %s1503, 32, %s1505, [#allocation4]
    $region61: #{tpu_custom_call.1} parent=1 // pred_fallthru
      _
    // Predicated region
    $region62: #{tpu_custom_call.1} parent=1 // pred_check
      _
    $region63: #{tpu_custom_call.1} parent=1 // pred_check_branch
      %1509 = sbr.rel (0) target = $region65
    $region64: #{tpu_custom_call.1} parent=1 // pred_region
      %1511 = dma.done [#allocation4], 32
    $region65: #{tpu_custom_call.1} parent=1 // pred_fallthru
      _
    %1512 = vsyncpa [#allocation3], 1
    %1513 = vsyncpa [#allocation4], 1

</llo_original>
